<compile_context>
chip_gen: v7x
topology: tpu7x:2x2x1
jax: 0.10.0
libtpu: 0.0.40
codegen_flags: <defaults>
</compile_context>

<pallas_src>
import functools
from math import sqrt

import jax
import jax.numpy as jnp
from jax.experimental import pallas as pl
from jax.experimental.pallas import tpu as pltpu

# ----------------------------------------------------------------------------
# VPSampler hyperparameters (PyTorch __init__ defaults; num_steps shrunk for
# the demo — it is a hyperparameter, not part of the math).
# ----------------------------------------------------------------------------
BETA_D = 19.9
BETA_MIN = 0.1
S_CHURN = 200.0
S_NOISE = 1.0
S_MIN = 0.0
S_MAX = float("inf")
COND_SCALE = 1.0
USE_HEUN = True
NUM_STEPS = 8

_NCOEF = 11         # packed per-step scalar coefficients (flat SMEM table)
_MAX_TILE_P = 512   # lane-axis tile cap (vreg pressure, not VMEM)


# ----------------------------------------------------------------------------
# Scalar VP-schedule math (host/JAX glue; cheap per-step transcendentals).
# ----------------------------------------------------------------------------
def t_to_sigma(t):
    return jnp.sqrt(jnp.exp(0.5 * BETA_D * t ** 2 + BETA_MIN * t) - 1.0)


def sigma_to_t(sigma):
    return (jnp.sqrt(BETA_MIN ** 2 + 2.0 * BETA_D * jnp.log(sigma ** 2 + 1.0))
            - BETA_MIN) / BETA_D


def t_to_sigma_deriv(t):
    s = t_to_sigma(t)
    return 0.5 * (BETA_MIN + BETA_D * t) * (s + 1.0 / s)


def scale(t):
    return 1.0 / jnp.sqrt(1.0 + t_to_sigma(t) ** 2)


def scale_deriv(t):
    return -t_to_sigma(t) * t_to_sigma_deriv(t) * scale(t) ** 3


def _coef_table(ts, gammas, use_heun):
    """(num_steps, 11) f32 table of per-step scalar coefficients."""
    t = ts[:-1]
    t_next = ts[1:]

    sig_t = t_to_sigma(t)
    t_hat = sigma_to_t(sig_t + gammas * sig_t)
    sig_hat = t_to_sigma(t_hat)
    s_hat = scale(t_hat)

    c1 = s_hat / scale(t)                                            # x_hat x-coef
    c2 = jnp.sqrt(jnp.maximum(sig_hat ** 2 - sig_t ** 2, 0.0)) * s_hat * S_NOISE
    # gamma == 0  =>  sigma_hat == sigma analytically; kill the f32 round-trip
    # residue so zero-churn runs are exactly noise-free.
    c2 = jnp.where(gammas > 0.0, c2, 0.0)
    inv_s_hat = 1.0 / s_hat
    cd1 = t_to_sigma_deriv(t_hat) / sig_hat + scale_deriv(t_hat) / s_hat
    cd2 = t_to_sigma_deriv(t_hat) * s_hat / sig_hat
    h = t_next - t_hat

    # Heun point t' = t_hat + h = t_next.  Guard t'=0 on the final Euler-only
    # step so the (unused, zero-weighted) coefficients stay finite.
    heun = jnp.logical_and(bool(use_heun), t_next > 0)
    t_pr = jnp.where(t_next > 0, t_next, 1.0)
    sig_pr = t_to_sigma(t_pr)
    s_pr = scale(t_pr)
    inv_s_pr = 1.0 / s_pr
    cp1 = t_to_sigma_deriv(t_pr) / sig_pr + scale_deriv(t_pr) / s_pr
    cp2 = t_to_sigma_deriv(t_pr) * s_pr / sig_pr

    w1 = jnp.where(heun, 0.5 * h, h)      # weight on d
    w2 = jnp.where(heun, 0.5 * h, 0.0)    # weight on d'

    return jnp.stack([c1, c2, inv_s_hat, cd1, cd2, h,
                      inv_s_pr, cp1, cp2, w1, w2],
                     axis=1).astype(jnp.float32)


def _prepare(noise_nchw, sigmas, num_steps, use_heun, s_churn):
    """Shared schedule / layout prep (mirrors VPSampler.forward prologue)."""
    B, C, H, W_sp = noise_nchw.shape
    ts = sigma_to_t(sigmas)
    ts = jnp.concatenate([ts, jnp.zeros_like(ts[:1])])
    gamma_val = min(s_churn / num_steps, sqrt(2.0) - 1.0)
    gammas = jnp.where((sigmas >= S_MIN) & (sigmas <= S_MAX), gamma_val, 0.0)

    # Lane-dense layout: rows = B*C (sublanes), cols = H*W (lanes).  Pure
    # reshape of NCHW — no transpose needed.
    x0 = noise_nchw.reshape(B * C, H * W_sp).astype(jnp.float32)
    x0 = x0 * (sigmas[0] * scale(ts[0]))

    coefs = _coef_table(ts, gammas, use_heun)
    return x0, coefs


# ----------------------------------------------------------------------------
# Pallas kernel: the FULL sampler loop (churn + denoise + Euler [+ Heun]) for
# one pixel tile, with x resident in VMEM/vregs across all steps.
# ----------------------------------------------------------------------------
def _make_kernel(num_steps, use_heun, churn):
    def kernel(*refs):
        if churn:
            coef_ref, wblk_ref, bias_ref, x_ref, eps_ref, out_ref = refs
        else:
            coef_ref, wblk_ref, bias_ref, x_ref, out_ref = refs
            eps_ref = None

        wblk = wblk_ref[...]     # (R, R) block-diag channel-mix (cond folded in)
        bias = bias_ref[...]     # (R, 1)

        def denoise(xin):
            # Synthetic per-pixel linear denoiser over channels, on the MXU:
            # one (R,R) x (R,tile_p) matmul for the whole slab.
            return jnp.dot(wblk, xin, preferred_element_type=jnp.float32) + bias

        x = x_ref[...]                       # resident across all steps

        for i in range(num_steps):           # fully unrolled (static, small)
            base = i * _NCOEF
            c1 = coef_ref[base + 0]
            c2 = coef_ref[base + 1]
            inv_s_hat = coef_ref[base + 2]
            cd1 = coef_ref[base + 3]
            cd2 = coef_ref[base + 4]
            h = coef_ref[base + 5]
            inv_s_pr = coef_ref[base + 6]
            cp1 = coef_ref[base + 7]
            cp2 = coef_ref[base + 8]
            w1 = coef_ref[base + 9]
            w2 = coef_ref[base + 10]

            # churn (statically elided when s_churn == 0)
            if churn:
                x_hat = c1 * x + c2 * eps_ref[i]
            else:
                x_hat = c1 * x

            # denoise at t_hat, Euler direction
            den = denoise(x_hat * inv_s_hat)
            d = cd1 * x_hat - cd2 * den

            # Heun correction — statically skipped on the final step
            # (t_next == 0 => zero-weighted) and when use_heun=False.
            if use_heun and i < num_steps - 1:
                x_eul = x_hat + h * d
                den2 = denoise(x_eul * inv_s_pr)
                d2 = cp1 * x_eul - cp2 * den2
                x = x_hat + w1 * d + w2 * d2
            else:
                x = x_hat + w1 * d

        out_ref[...] = x

    return kernel


def _pick_tile_p(p, max_tile=_MAX_TILE_P):
    """Largest multiple-of-128 divisor of p, capped for vreg pressure and
    capped at p//2 so the grid has >= 2 tiles (v7x second TensorCore)."""
    cap = min(max_tile, p // 2 if p >= 256 else p)
    best = 0
    t = 128
    while t <= min(p, cap):
        if p % t == 0:
            best = t
        t += 128
    return best if best else p


def _sampler_pallas_call(coefs_flat, wblk, bias_col, x0, eps2d, *,
                         num_steps, use_heun, churn):
    R, P = x0.shape
    tile_p = _pick_tile_p(P)
    grid = (P // tile_p,)

    kernel = _make_kernel(num_steps, use_heun, churn)

    in_specs = [
        pl.BlockSpec(memory_space=pltpu.MemorySpace.SMEM),   # coef table (1-D)
        pl.BlockSpec((R, R), lambda p: (0, 0)),              # block-diag weights
        pl.BlockSpec((R, 1), lambda p: (0, 0)),              # bias column
        pl.BlockSpec((R, tile_p), lambda p: (0, p)),         # x (VMEM)
    ]
    args = [coefs_flat, wblk, bias_col, x0]
    if churn:
        in_specs.append(
            pl.BlockSpec((num_steps, R, tile_p), lambda p: (0, 0, p)))
        args.append(eps2d)

    den_per_step = 2 if use_heun else 1
    flops = int(num_steps * P * (den_per_step * 2 * R * R + 20 * R))
    bytes_accessed = int((2 * R * P + (num_steps * R * P if churn else 0)
                          + coefs_flat.size + wblk.size + bias_col.size) * 4)

    return pl.pallas_call(
        kernel,
        out_shape=jax.ShapeDtypeStruct((R, P), jnp.float32),
        grid=grid,
        in_specs=in_specs,
        out_specs=pl.BlockSpec((R, tile_p), lambda p: (0, p)),
        compiler_params=pltpu.CompilerParams(
            dimension_semantics=("parallel",)),               # v7x megacore
        cost_estimate=pl.CostEstimate(flops=flops, transcendentals=0,
                                      bytes_accessed=bytes_accessed),
    )(*args)


# ----------------------------------------------------------------------------
# Full sampler forwards (mirror VPSampler.forward).
# ----------------------------------------------------------------------------
@functools.partial(jax.jit, static_argnames=("num_steps", "use_heun", "s_churn"))
def vp_sample_pallas(noise_nchw, sigmas, eps_steps, w, b, *,
                     num_steps, use_heun, s_churn):
    B, C, H, W_sp = noise_nchw.shape
    R, P = B * C, H * W_sp
    churn = float(s_churn) > 0.0

    x0, coefs = _prepare(noise_nchw, sigmas, num_steps, use_heun, s_churn)
    coefs_flat = coefs.reshape(-1)

    # Block-diagonal denoiser weights (cond_scale folded in) + bias column.
    w32 = w.astype(jnp.float32)
    wblk = COND_SCALE * jnp.kron(jnp.eye(B, dtype=jnp.float32), w32.T)
    bias_col = jnp.tile(b.reshape(-1).astype(jnp.float32), (B,)).reshape(R, 1)

    eps2d = None
    if churn:
        if eps_steps is None:
            raise ValueError("eps_steps required when s_churn > 0")
        eps2d = eps_steps.reshape(num_steps, R, P).astype(jnp.float32)

    out2d = _sampler_pallas_call(coefs_flat, wblk, bias_col, x0, eps2d,
                                 num_steps=num_steps, use_heun=use_heun,
                                 churn=churn)
    return out2d.reshape(B, C, H, W_sp)


@functools.partial(jax.jit, static_argnames=("num_steps", "use_heun", "s_churn"))
def vp_sample_ref(noise_nchw, sigmas, eps_steps, w, b, *,
                  num_steps, use_heun, s_churn):
    """Pure-JAX reference (takes the churn noise explicitly)."""
    B, C, H, W_sp = noise_nchw.shape
    P = H * W_sp
    x, coefs = _prepare(noise_nchw, sigmas, num_steps, use_heun, s_churn)
    eps2d = eps_steps.reshape(num_steps, B * C, P).astype(jnp.float32)

    def denoise(xin):
        x3 = xin.reshape(B, C, P)
        den3 = COND_SCALE * jnp.einsum("ij,bip->bjp", w, x3) + b.reshape(1, C, 1)
        return den3.reshape(B * C, P)

    for i in range(num_steps):
        (c1, c2, inv_s_hat, cd1, cd2, h, inv_s_pr, cp1, cp2,
         w1, w2) = [coefs[i, k] for k in range(_NCOEF)]
        x_hat = c1 * x + c2 * eps2d[i]
        den = denoise(x_hat * inv_s_hat)
        d = cd1 * x_hat - cd2 * den
        x_eul = x_hat + h * d
        den2 = denoise(x_eul * inv_s_pr)
        d2 = cp1 * x_eul - cp2 * den2
        x = x_hat + w1 * d + w2 * d2
    return x.reshape(B, C, H, W_sp)


# ----------------------------------------------------------------------------
# Demo / self-test
# ----------------------------------------------------------------------------
if __name__ == "__main__":
    key = jax.random.PRNGKey(0)
    k_noise, k_eps = jax.random.split(key)

    B, C, H, W_sp = 2, 4, 16, 16
    noise = jax.random.normal(k_noise, (B, C, H, W_sp), jnp.float32)

    # Deterministic synthetic denoiser parameters (the module's `net` is
    # external; VPSampler itself has no weights).
    w = (0.05 * jnp.eye(C, dtype=jnp.float32)
         + 0.01 * jnp.arange(C * C, dtype=jnp.float32).reshape(C, C) / (C * C))
    b = 0.001 * jnp.arange(C, dtype=jnp.float32).reshape(1, C)

    # Decreasing sigma schedule of length NUM_STEPS (passed in, like `sigmas`).
    t_grid = jnp.linspace(1.0, 1e-3, NUM_STEPS).astype(jnp.float32)
    sigmas = t_to_sigma(t_grid)

    # Per-step churn noise (host-side equivalent of torch.randn_like).
    eps_steps = jax.random.normal(k_eps, (NUM_STEPS, B, C, H, W_sp), jnp.float32)

    # 1) Stochastic run (module defaults): kernel vs. pure-JAX reference with
    #    the SAME noise stream.
    out = jax.block_until_ready(
        vp_sample_pallas(noise, sigmas, eps_steps, w, b,
                         num_steps=NUM_STEPS, use_heun=USE_HEUN,
                         s_churn=S_CHURN))
    assert out.shape == (B, C, H, W_sp)
    assert bool(jnp.all(jnp.isfinite(out)))
    ref = jax.block_until_ready(
        vp_sample_ref(noise, sigmas, eps_steps, w, b,
                      num_steps=NUM_STEPS, use_heun=USE_HEUN,
                      s_churn=S_CHURN))
    assert bool(jnp.allclose(out, ref, rtol=1e-3, atol=1e-3)), \
        float(jnp.max(jnp.abs(out - ref)))

    # 2) Determinism: same inputs -> bitwise-identical result.
    out2 = jax.block_until_ready(
        vp_sample_pallas(noise, sigmas, eps_steps, w, b,
                         num_steps=NUM_STEPS, use_heun=USE_HEUN,
                         s_churn=S_CHURN))
    assert bool(jnp.array_equal(out, out2))

    # 3) Zero-churn path (exercises the statically noise-free kernel variant,
    #    no eps input at all) vs. reference with zero noise.
    out_nc = jax.block_until_ready(
        vp_sample_pallas(noise, sigmas, None, w, b,
                         num_steps=NUM_STEPS, use_heun=USE_HEUN, s_churn=0.0))
    eps0 = jnp.zeros_like(eps_steps)
    ref_nc = jax.block_until_ready(
        vp_sample_ref(noise, sigmas, eps0, w, b,
                      num_steps=NUM_STEPS, use_heun=USE_HEUN, s_churn=0.0))
    assert bool(jnp.allclose(out_nc, ref_nc, rtol=1e-3, atol=1e-3)), \
        float(jnp.max(jnp.abs(out_nc - ref_nc)))

    print("KERNEL_OK")
</pallas_src>

<mosaic_0001>
module attributes {stable_mosaic.version = 11 : i64} {
  func.func @kernel(%arg0: i32, %arg1: memref<88xf32, #tpu.memory_space<smem>>, %arg2: memref<8x8xf32, #tpu.memory_space<vmem>>, %arg3: memref<8x1xf32, #tpu.memory_space<vmem>>, %arg4: memref<8x128xf32, #tpu.memory_space<vmem>>, %arg5: memref<8x8x128xf32, #tpu.memory_space<vmem>>, %arg6: memref<8x128xf32, #tpu.memory_space<vmem>>) attributes {dimension_semantics = [#tpu.dimension_semantics<parallel>], iteration_bounds = array<i64: 2>, scalar_prefetch = 0 : i64, scratch_operands = 0 : i64, tpu.core_type = #tpu.core_type<tc>, window_params = [{transform_indices = @transform_0, window_bounds = array<i64: 88>}, {pipeline_mode = #tpu.pipeline_mode<synchronous>, transform_indices = @transform_1, window_bounds = array<i64: 8, 8>}, {pipeline_mode = #tpu.pipeline_mode<synchronous>, transform_indices = @transform_2, window_bounds = array<i64: 8, 1>}, {transform_indices = @transform_3, window_bounds = array<i64: 8, 128>}, {transform_indices = @transform_4, window_bounds = array<i64: 8, 8, 128>}, {transform_indices = @transform_5, window_bounds = array<i64: 8, 128>}]} {
    %c0 = arith.constant 0 : index
    %c0_0 = arith.constant 0 : index
    %0 = vector.load %arg2[%c0, %c0_0] : memref<8x8xf32, #tpu.memory_space<vmem>>, vector<8x8xf32>
    %c0_1 = arith.constant 0 : index
    %c0_2 = arith.constant 0 : index
    %1 = vector.load %arg3[%c0_1, %c0_2] : memref<8x1xf32, #tpu.memory_space<vmem>>, vector<8x1xf32>
    %c0_3 = arith.constant 0 : index
    %c0_4 = arith.constant 0 : index
    %2 = vector.load %arg4[%c0_3, %c0_4] : memref<8x128xf32, #tpu.memory_space<vmem>>, vector<8x128xf32>
    %c0_5 = arith.constant 0 : index
    %3 = memref.load %arg1[%c0_5] : memref<88xf32, #tpu.memory_space<smem>>
    %c1 = arith.constant 1 : index
    %4 = memref.load %arg1[%c1] : memref<88xf32, #tpu.memory_space<smem>>
    %c2 = arith.constant 2 : index
    %5 = memref.load %arg1[%c2] : memref<88xf32, #tpu.memory_space<smem>>
    %c3 = arith.constant 3 : index
    %6 = memref.load %arg1[%c3] : memref<88xf32, #tpu.memory_space<smem>>
    %c4 = arith.constant 4 : index
    %7 = memref.load %arg1[%c4] : memref<88xf32, #tpu.memory_space<smem>>
    %c5 = arith.constant 5 : index
    %8 = memref.load %arg1[%c5] : memref<88xf32, #tpu.memory_space<smem>>
    %c6 = arith.constant 6 : index
    %9 = memref.load %arg1[%c6] : memref<88xf32, #tpu.memory_space<smem>>
    %c7 = arith.constant 7 : index
    %10 = memref.load %arg1[%c7] : memref<88xf32, #tpu.memory_space<smem>>
    %c8 = arith.constant 8 : index
    %11 = memref.load %arg1[%c8] : memref<88xf32, #tpu.memory_space<smem>>
    %c9 = arith.constant 9 : index
    %12 = memref.load %arg1[%c9] : memref<88xf32, #tpu.memory_space<smem>>
    %c10 = arith.constant 10 : index
    %13 = memref.load %arg1[%c10] : memref<88xf32, #tpu.memory_space<smem>>
    %14 = vector.broadcast %3 : f32 to vector<8x128xf32>
    %15 = arith.mulf %14, %2 : vector<8x128xf32>
    %c0_6 = arith.constant 0 : index
    %c0_7 = arith.constant 0 : index
    %c0_8 = arith.constant 0 : index
    %16 = vector.load %arg5[%c0_6, %c0_7, %c0_8] : memref<8x8x128xf32, #tpu.memory_space<vmem>>, vector<1x8x128xf32>
    %17 = vector.shape_cast %16 : vector<1x8x128xf32> to vector<8x128xf32>
    %18 = vector.broadcast %4 : f32 to vector<8x128xf32>
    %19 = arith.mulf %18, %17 : vector<8x128xf32>
    %20 = arith.addf %15, %19 : vector<8x128xf32>
    %21 = vector.broadcast %5 : f32 to vector<8x128xf32>
    %22 = arith.mulf %20, %21 : vector<8x128xf32>
    %cst = arith.constant dense<0.000000e+00> : vector<8x128xf32>
    %23 = tpu.matmul %0, %22, %cst {dimension_numbers = #tpu.dot_dimension_numbers<[1], [0], [0], [1], [0, 0, 1, 1], [], []>} : vector<8x8xf32>, vector<8x128xf32>, vector<8x128xf32> -> vector<8x128xf32>
    %24 = vector.broadcast %1 : vector<8x1xf32> to vector<8x128xf32>
    %25 = arith.addf %23, %24 : vector<8x128xf32>
    %26 = vector.broadcast %6 : f32 to vector<8x128xf32>
    %27 = arith.mulf %26, %20 : vector<8x128xf32>
    %28 = vector.broadcast %7 : f32 to vector<8x128xf32>
    %29 = arith.mulf %28, %25 : vector<8x128xf32>
    %30 = arith.subf %27, %29 : vector<8x128xf32>
    %31 = vector.broadcast %8 : f32 to vector<8x128xf32>
    %32 = arith.mulf %31, %30 : vector<8x128xf32>
    %33 = arith.addf %20, %32 : vector<8x128xf32>
    %34 = vector.broadcast %9 : f32 to vector<8x128xf32>
    %35 = arith.mulf %33, %34 : vector<8x128xf32>
    %cst_9 = arith.constant dense<0.000000e+00> : vector<8x128xf32>
    %36 = tpu.matmul %0, %35, %cst_9 {dimension_numbers = #tpu.dot_dimension_numbers<[1], [0], [0], [1], [0, 0, 1, 1], [], []>} : vector<8x8xf32>, vector<8x128xf32>, vector<8x128xf32> -> vector<8x128xf32>
    %37 = vector.broadcast %1 : vector<8x1xf32> to vector<8x128xf32>
    %38 = arith.addf %36, %37 : vector<8x128xf32>
    %39 = vector.broadcast %10 : f32 to vector<8x128xf32>
    %40 = arith.mulf %39, %33 : vector<8x128xf32>
    %41 = vector.broadcast %11 : f32 to vector<8x128xf32>
    %42 = arith.mulf %41, %38 : vector<8x128xf32>
    %43 = arith.subf %40, %42 : vector<8x128xf32>
    %44 = vector.broadcast %12 : f32 to vector<8x128xf32>
    %45 = arith.mulf %44, %30 : vector<8x128xf32>
    %46 = arith.addf %20, %45 : vector<8x128xf32>
    %47 = vector.broadcast %13 : f32 to vector<8x128xf32>
    %48 = arith.mulf %47, %43 : vector<8x128xf32>
    %49 = arith.addf %46, %48 : vector<8x128xf32>
    %c11 = arith.constant 11 : index
    %50 = memref.load %arg1[%c11] : memref<88xf32, #tpu.memory_space<smem>>
    %c12 = arith.constant 12 : index
    %51 = memref.load %arg1[%c12] : memref<88xf32, #tpu.memory_space<smem>>
    %c13 = arith.constant 13 : index
    %52 = memref.load %arg1[%c13] : memref<88xf32, #tpu.memory_space<smem>>
    %c14 = arith.constant 14 : index
    %53 = memref.load %arg1[%c14] : memref<88xf32, #tpu.memory_space<smem>>
    %c15 = arith.constant 15 : index
    %54 = memref.load %arg1[%c15] : memref<88xf32, #tpu.memory_space<smem>>
    %c16 = arith.constant 16 : index
    %55 = memref.load %arg1[%c16] : memref<88xf32, #tpu.memory_space<smem>>
    %c17 = arith.constant 17 : index
    %56 = memref.load %arg1[%c17] : memref<88xf32, #tpu.memory_space<smem>>
    %c18 = arith.constant 18 : index
    %57 = memref.load %arg1[%c18] : memref<88xf32, #tpu.memory_space<smem>>
    %c19 = arith.constant 19 : index
    %58 = memref.load %arg1[%c19] : memref<88xf32, #tpu.memory_space<smem>>
    %c20 = arith.constant 20 : index
    %59 = memref.load %arg1[%c20] : memref<88xf32, #tpu.memory_space<smem>>
    %c21 = arith.constant 21 : index
    %60 = memref.load %arg1[%c21] : memref<88xf32, #tpu.memory_space<smem>>
    %61 = vector.broadcast %50 : f32 to vector<8x128xf32>
    %62 = arith.mulf %61, %49 : vector<8x128xf32>
    %c1_10 = arith.constant 1 : index
    %c0_11 = arith.constant 0 : index
    %c0_12 = arith.constant 0 : index
    %63 = vector.load %arg5[%c1_10, %c0_11, %c0_12] : memref<8x8x128xf32, #tpu.memory_space<vmem>>, vector<1x8x128xf32>
    %64 = vector.shape_cast %63 : vector<1x8x128xf32> to vector<8x128xf32>
    %65 = vector.broadcast %51 : f32 to vector<8x128xf32>
    %66 = arith.mulf %65, %64 : vector<8x128xf32>
    %67 = arith.addf %62, %66 : vector<8x128xf32>
    %68 = vector.broadcast %52 : f32 to vector<8x128xf32>
    %69 = arith.mulf %67, %68 : vector<8x128xf32>
    %cst_13 = arith.constant dense<0.000000e+00> : vector<8x128xf32>
    %70 = tpu.matmul %0, %69, %cst_13 {dimension_numbers = #tpu.dot_dimension_numbers<[1], [0], [0], [1], [0, 0, 1, 1], [], []>} : vector<8x8xf32>, vector<8x128xf32>, vector<8x128xf32> -> vector<8x128xf32>
    %71 = vector.broadcast %1 : vector<8x1xf32> to vector<8x128xf32>
    %72 = arith.addf %70, %71 : vector<8x128xf32>
    %73 = vector.broadcast %53 : f32 to vector<8x128xf32>
    %74 = arith.mulf %73, %67 : vector<8x128xf32>
    %75 = vector.broadcast %54 : f32 to vector<8x128xf32>
    %76 = arith.mulf %75, %72 : vector<8x128xf32>
    %77 = arith.subf %74, %76 : vector<8x128xf32>
    %78 = vector.broadcast %55 : f32 to vector<8x128xf32>
    %79 = arith.mulf %78, %77 : vector<8x128xf32>
    %80 = arith.addf %67, %79 : vector<8x128xf32>
    %81 = vector.broadcast %56 : f32 to vector<8x128xf32>
    %82 = arith.mulf %80, %81 : vector<8x128xf32>
    %cst_14 = arith.constant dense<0.000000e+00> : vector<8x128xf32>
    %83 = tpu.matmul %0, %82, %cst_14 {dimension_numbers = #tpu.dot_dimension_numbers<[1], [0], [0], [1], [0, 0, 1, 1], [], []>} : vector<8x8xf32>, vector<8x128xf32>, vector<8x128xf32> -> vector<8x128xf32>
    %84 = vector.broadcast %1 : vector<8x1xf32> to vector<8x128xf32>
    %85 = arith.addf %83, %84 : vector<8x128xf32>
    %86 = vector.broadcast %57 : f32 to vector<8x128xf32>
    %87 = arith.mulf %86, %80 : vector<8x128xf32>
    %88 = vector.broadcast %58 : f32 to vector<8x128xf32>
    %89 = arith.mulf %88, %85 : vector<8x128xf32>
    %90 = arith.subf %87, %89 : vector<8x128xf32>
    %91 = vector.broadcast %59 : f32 to vector<8x128xf32>
    %92 = arith.mulf %91, %77 : vector<8x128xf32>
    %93 = arith.addf %67, %92 : vector<8x128xf32>
    %94 = vector.broadcast %60 : f32 to vector<8x128xf32>
    %95 = arith.mulf %94, %90 : vector<8x128xf32>
    %96 = arith.addf %93, %95 : vector<8x128xf32>
    %c22 = arith.constant 22 : index
    %97 = memref.load %arg1[%c22] : memref<88xf32, #tpu.memory_space<smem>>
    %c23 = arith.constant 23 : index
    %98 = memref.load %arg1[%c23] : memref<88xf32, #tpu.memory_space<smem>>
    %c24 = arith.constant 24 : index
    %99 = memref.load %arg1[%c24] : memref<88xf32, #tpu.memory_space<smem>>
    %c25 = arith.constant 25 : index
    %100 = memref.load %arg1[%c25] : memref<88xf32, #tpu.memory_space<smem>>
    %c26 = arith.constant 26 : index
    %101 = memref.load %arg1[%c26] : memref<88xf32, #tpu.memory_space<smem>>
    %c27 = arith.constant 27 : index
    %102 = memref.load %arg1[%c27] : memref<88xf32, #tpu.memory_space<smem>>
    %c28 = arith.constant 28 : index
    %103 = memref.load %arg1[%c28] : memref<88xf32, #tpu.memory_space<smem>>
    %c29 = arith.constant 29 : index
    %104 = memref.load %arg1[%c29] : memref<88xf32, #tpu.memory_space<smem>>
    %c30 = arith.constant 30 : index
    %105 = memref.load %arg1[%c30] : memref<88xf32, #tpu.memory_space<smem>>
    %c31 = arith.constant 31 : index
    %106 = memref.load %arg1[%c31] : memref<88xf32, #tpu.memory_space<smem>>
    %c32 = arith.constant 32 : index
    %107 = memref.load %arg1[%c32] : memref<88xf32, #tpu.memory_space<smem>>
    %108 = vector.broadcast %97 : f32 to vector<8x128xf32>
    %109 = arith.mulf %108, %96 : vector<8x128xf32>
    %c2_15 = arith.constant 2 : index
    %c0_16 = arith.constant 0 : index
    %c0_17 = arith.constant 0 : index
    %110 = vector.load %arg5[%c2_15, %c0_16, %c0_17] : memref<8x8x128xf32, #tpu.memory_space<vmem>>, vector<1x8x128xf32>
    %111 = vector.shape_cast %110 : vector<1x8x128xf32> to vector<8x128xf32>
    %112 = vector.broadcast %98 : f32 to vector<8x128xf32>
    %113 = arith.mulf %112, %111 : vector<8x128xf32>
    %114 = arith.addf %109, %113 : vector<8x128xf32>
    %115 = vector.broadcast %99 : f32 to vector<8x128xf32>
    %116 = arith.mulf %114, %115 : vector<8x128xf32>
    %cst_18 = arith.constant dense<0.000000e+00> : vector<8x128xf32>
    %117 = tpu.matmul %0, %116, %cst_18 {dimension_numbers = #tpu.dot_dimension_numbers<[1], [0], [0], [1], [0, 0, 1, 1], [], []>} : vector<8x8xf32>, vector<8x128xf32>, vector<8x128xf32> -> vector<8x128xf32>
    %118 = vector.broadcast %1 : vector<8x1xf32> to vector<8x128xf32>
    %119 = arith.addf %117, %118 : vector<8x128xf32>
    %120 = vector.broadcast %100 : f32 to vector<8x128xf32>
    %121 = arith.mulf %120, %114 : vector<8x128xf32>
    %122 = vector.broadcast %101 : f32 to vector<8x128xf32>
    %123 = arith.mulf %122, %119 : vector<8x128xf32>
    %124 = arith.subf %121, %123 : vector<8x128xf32>
    %125 = vector.broadcast %102 : f32 to vector<8x128xf32>
    %126 = arith.mulf %125, %124 : vector<8x128xf32>
    %127 = arith.addf %114, %126 : vector<8x128xf32>
    %128 = vector.broadcast %103 : f32 to vector<8x128xf32>
    %129 = arith.mulf %127, %128 : vector<8x128xf32>
    %cst_19 = arith.constant dense<0.000000e+00> : vector<8x128xf32>
    %130 = tpu.matmul %0, %129, %cst_19 {dimension_numbers = #tpu.dot_dimension_numbers<[1], [0], [0], [1], [0, 0, 1, 1], [], []>} : vector<8x8xf32>, vector<8x128xf32>, vector<8x128xf32> -> vector<8x128xf32>
    %131 = vector.broadcast %1 : vector<8x1xf32> to vector<8x128xf32>
    %132 = arith.addf %130, %131 : vector<8x128xf32>
    %133 = vector.broadcast %104 : f32 to vector<8x128xf32>
    %134 = arith.mulf %133, %127 : vector<8x128xf32>
    %135 = vector.broadcast %105 : f32 to vector<8x128xf32>
    %136 = arith.mulf %135, %132 : vector<8x128xf32>
    %137 = arith.subf %134, %136 : vector<8x128xf32>
    %138 = vector.broadcast %106 : f32 to vector<8x128xf32>
    %139 = arith.mulf %138, %124 : vector<8x128xf32>
    %140 = arith.addf %114, %139 : vector<8x128xf32>
    %141 = vector.broadcast %107 : f32 to vector<8x128xf32>
    %142 = arith.mulf %141, %137 : vector<8x128xf32>
    %143 = arith.addf %140, %142 : vector<8x128xf32>
    %c33 = arith.constant 33 : index
    %144 = memref.load %arg1[%c33] : memref<88xf32, #tpu.memory_space<smem>>
    %c34 = arith.constant 34 : index
    %145 = memref.load %arg1[%c34] : memref<88xf32, #tpu.memory_space<smem>>
    %c35 = arith.constant 35 : index
    %146 = memref.load %arg1[%c35] : memref<88xf32, #tpu.memory_space<smem>>
    %c36 = arith.constant 36 : index
    %147 = memref.load %arg1[%c36] : memref<88xf32, #tpu.memory_space<smem>>
    %c37 = arith.constant 37 : index
    %148 = memref.load %arg1[%c37] : memref<88xf32, #tpu.memory_space<smem>>
    %c38 = arith.constant 38 : index
    %149 = memref.load %arg1[%c38] : memref<88xf32, #tpu.memory_space<smem>>
    %c39 = arith.constant 39 : index
    %150 = memref.load %arg1[%c39] : memref<88xf32, #tpu.memory_space<smem>>
    %c40 = arith.constant 40 : index
    %151 = memref.load %arg1[%c40] : memref<88xf32, #tpu.memory_space<smem>>
    %c41 = arith.constant 41 : index
    %152 = memref.load %arg1[%c41] : memref<88xf32, #tpu.memory_space<smem>>
    %c42 = arith.constant 42 : index
    %153 = memref.load %arg1[%c42] : memref<88xf32, #tpu.memory_space<smem>>
    %c43 = arith.constant 43 : index
    %154 = memref.load %arg1[%c43] : memref<88xf32, #tpu.memory_space<smem>>
    %155 = vector.broadcast %144 : f32 to vector<8x128xf32>
    %156 = arith.mulf %155, %143 : vector<8x128xf32>
    %c3_20 = arith.constant 3 : index
    %c0_21 = arith.constant 0 : index
    %c0_22 = arith.constant 0 : index
    %157 = vector.load %arg5[%c3_20, %c0_21, %c0_22] : memref<8x8x128xf32, #tpu.memory_space<vmem>>, vector<1x8x128xf32>
    %158 = vector.shape_cast %157 : vector<1x8x128xf32> to vector<8x128xf32>
    %159 = vector.broadcast %145 : f32 to vector<8x128xf32>
    %160 = arith.mulf %159, %158 : vector<8x128xf32>
    %161 = arith.addf %156, %160 : vector<8x128xf32>
    %162 = vector.broadcast %146 : f32 to vector<8x128xf32>
    %163 = arith.mulf %161, %162 : vector<8x128xf32>
    %cst_23 = arith.constant dense<0.000000e+00> : vector<8x128xf32>
    %164 = tpu.matmul %0, %163, %cst_23 {dimension_numbers = #tpu.dot_dimension_numbers<[1], [0], [0], [1], [0, 0, 1, 1], [], []>} : vector<8x8xf32>, vector<8x128xf32>, vector<8x128xf32> -> vector<8x128xf32>
    %165 = vector.broadcast %1 : vector<8x1xf32> to vector<8x128xf32>
    %166 = arith.addf %164, %165 : vector<8x128xf32>
    %167 = vector.broadcast %147 : f32 to vector<8x128xf32>
    %168 = arith.mulf %167, %161 : vector<8x128xf32>
    %169 = vector.broadcast %148 : f32 to vector<8x128xf32>
    %170 = arith.mulf %169, %166 : vector<8x128xf32>
    %171 = arith.subf %168, %170 : vector<8x128xf32>
    %172 = vector.broadcast %149 : f32 to vector<8x128xf32>
    %173 = arith.mulf %172, %171 : vector<8x128xf32>
    %174 = arith.addf %161, %173 : vector<8x128xf32>
    %175 = vector.broadcast %150 : f32 to vector<8x128xf32>
    %176 = arith.mulf %174, %175 : vector<8x128xf32>
    %cst_24 = arith.constant dense<0.000000e+00> : vector<8x128xf32>
    %177 = tpu.matmul %0, %176, %cst_24 {dimension_numbers = #tpu.dot_dimension_numbers<[1], [0], [0], [1], [0, 0, 1, 1], [], []>} : vector<8x8xf32>, vector<8x128xf32>, vector<8x128xf32> -> vector<8x128xf32>
    %178 = vector.broadcast %1 : vector<8x1xf32> to vector<8x128xf32>
    %179 = arith.addf %177, %178 : vector<8x128xf32>
    %180 = vector.broadcast %151 : f32 to vector<8x128xf32>
    %181 = arith.mulf %180, %174 : vector<8x128xf32>
    %182 = vector.broadcast %152 : f32 to vector<8x128xf32>
    %183 = arith.mulf %182, %179 : vector<8x128xf32>
    %184 = arith.subf %181, %183 : vector<8x128xf32>
    %185 = vector.broadcast %153 : f32 to vector<8x128xf32>
    %186 = arith.mulf %185, %171 : vector<8x128xf32>
    %187 = arith.addf %161, %186 : vector<8x128xf32>
    %188 = vector.broadcast %154 : f32 to vector<8x128xf32>
    %189 = arith.mulf %188, %184 : vector<8x128xf32>
    %190 = arith.addf %187, %189 : vector<8x128xf32>
    %c44 = arith.constant 44 : index
    %191 = memref.load %arg1[%c44] : memref<88xf32, #tpu.memory_space<smem>>
    %c45 = arith.constant 45 : index
    %192 = memref.load %arg1[%c45] : memref<88xf32, #tpu.memory_space<smem>>
    %c46 = arith.constant 46 : index
    %193 = memref.load %arg1[%c46] : memref<88xf32, #tpu.memory_space<smem>>
    %c47 = arith.constant 47 : index
    %194 = memref.load %arg1[%c47] : memref<88xf32, #tpu.memory_space<smem>>
    %c48 = arith.constant 48 : index
    %195 = memref.load %arg1[%c48] : memref<88xf32, #tpu.memory_space<smem>>
    %c49 = arith.constant 49 : index
    %196 = memref.load %arg1[%c49] : memref<88xf32, #tpu.memory_space<smem>>
    %c50 = arith.constant 50 : index
    %197 = memref.load %arg1[%c50] : memref<88xf32, #tpu.memory_space<smem>>
    %c51 = arith.constant 51 : index
    %198 = memref.load %arg1[%c51] : memref<88xf32, #tpu.memory_space<smem>>
    %c52 = arith.constant 52 : index
    %199 = memref.load %arg1[%c52] : memref<88xf32, #tpu.memory_space<smem>>
    %c53 = arith.constant 53 : index
    %200 = memref.load %arg1[%c53] : memref<88xf32, #tpu.memory_space<smem>>
    %c54 = arith.constant 54 : index
    %201 = memref.load %arg1[%c54] : memref<88xf32, #tpu.memory_space<smem>>
    %202 = vector.broadcast %191 : f32 to vector<8x128xf32>
    %203 = arith.mulf %202, %190 : vector<8x128xf32>
    %c4_25 = arith.constant 4 : index
    %c0_26 = arith.constant 0 : index
    %c0_27 = arith.constant 0 : index
    %204 = vector.load %arg5[%c4_25, %c0_26, %c0_27] : memref<8x8x128xf32, #tpu.memory_space<vmem>>, vector<1x8x128xf32>
    %205 = vector.shape_cast %204 : vector<1x8x128xf32> to vector<8x128xf32>
    %206 = vector.broadcast %192 : f32 to vector<8x128xf32>
    %207 = arith.mulf %206, %205 : vector<8x128xf32>
    %208 = arith.addf %203, %207 : vector<8x128xf32>
    %209 = vector.broadcast %193 : f32 to vector<8x128xf32>
    %210 = arith.mulf %208, %209 : vector<8x128xf32>
    %cst_28 = arith.constant dense<0.000000e+00> : vector<8x128xf32>
    %211 = tpu.matmul %0, %210, %cst_28 {dimension_numbers = #tpu.dot_dimension_numbers<[1], [0], [0], [1], [0, 0, 1, 1], [], []>} : vector<8x8xf32>, vector<8x128xf32>, vector<8x128xf32> -> vector<8x128xf32>
    %212 = vector.broadcast %1 : vector<8x1xf32> to vector<8x128xf32>
    %213 = arith.addf %211, %212 : vector<8x128xf32>
    %214 = vector.broadcast %194 : f32 to vector<8x128xf32>
    %215 = arith.mulf %214, %208 : vector<8x128xf32>
    %216 = vector.broadcast %195 : f32 to vector<8x128xf32>
    %217 = arith.mulf %216, %213 : vector<8x128xf32>
    %218 = arith.subf %215, %217 : vector<8x128xf32>
    %219 = vector.broadcast %196 : f32 to vector<8x128xf32>
    %220 = arith.mulf %219, %218 : vector<8x128xf32>
    %221 = arith.addf %208, %220 : vector<8x128xf32>
    %222 = vector.broadcast %197 : f32 to vector<8x128xf32>
    %223 = arith.mulf %221, %222 : vector<8x128xf32>
    %cst_29 = arith.constant dense<0.000000e+00> : vector<8x128xf32>
    %224 = tpu.matmul %0, %223, %cst_29 {dimension_numbers = #tpu.dot_dimension_numbers<[1], [0], [0], [1], [0, 0, 1, 1], [], []>} : vector<8x8xf32>, vector<8x128xf32>, vector<8x128xf32> -> vector<8x128xf32>
    %225 = vector.broadcast %1 : vector<8x1xf32> to vector<8x128xf32>
    %226 = arith.addf %224, %225 : vector<8x128xf32>
    %227 = vector.broadcast %198 : f32 to vector<8x128xf32>
    %228 = arith.mulf %227, %221 : vector<8x128xf32>
    %229 = vector.broadcast %199 : f32 to vector<8x128xf32>
    %230 = arith.mulf %229, %226 : vector<8x128xf32>
    %231 = arith.subf %228, %230 : vector<8x128xf32>
    %232 = vector.broadcast %200 : f32 to vector<8x128xf32>
    %233 = arith.mulf %232, %218 : vector<8x128xf32>
    %234 = arith.addf %208, %233 : vector<8x128xf32>
    %235 = vector.broadcast %201 : f32 to vector<8x128xf32>
    %236 = arith.mulf %235, %231 : vector<8x128xf32>
    %237 = arith.addf %234, %236 : vector<8x128xf32>
    %c55 = arith.constant 55 : index
    %238 = memref.load %arg1[%c55] : memref<88xf32, #tpu.memory_space<smem>>
    %c56 = arith.constant 56 : index
    %239 = memref.load %arg1[%c56] : memref<88xf32, #tpu.memory_space<smem>>
    %c57 = arith.constant 57 : index
    %240 = memref.load %arg1[%c57] : memref<88xf32, #tpu.memory_space<smem>>
    %c58 = arith.constant 58 : index
    %241 = memref.load %arg1[%c58] : memref<88xf32, #tpu.memory_space<smem>>
    %c59 = arith.constant 59 : index
    %242 = memref.load %arg1[%c59] : memref<88xf32, #tpu.memory_space<smem>>
    %c60 = arith.constant 60 : index
    %243 = memref.load %arg1[%c60] : memref<88xf32, #tpu.memory_space<smem>>
    %c61 = arith.constant 61 : index
    %244 = memref.load %arg1[%c61] : memref<88xf32, #tpu.memory_space<smem>>
    %c62 = arith.constant 62 : index
    %245 = memref.load %arg1[%c62] : memref<88xf32, #tpu.memory_space<smem>>
    %c63 = arith.constant 63 : index
    %246 = memref.load %arg1[%c63] : memref<88xf32, #tpu.memory_space<smem>>
    %c64 = arith.constant 64 : index
    %247 = memref.load %arg1[%c64] : memref<88xf32, #tpu.memory_space<smem>>
    %c65 = arith.constant 65 : index
    %248 = memref.load %arg1[%c65] : memref<88xf32, #tpu.memory_space<smem>>
    %249 = vector.broadcast %238 : f32 to vector<8x128xf32>
    %250 = arith.mulf %249, %237 : vector<8x128xf32>
    %c5_30 = arith.constant 5 : index
    %c0_31 = arith.constant 0 : index
    %c0_32 = arith.constant 0 : index
    %251 = vector.load %arg5[%c5_30, %c0_31, %c0_32] : memref<8x8x128xf32, #tpu.memory_space<vmem>>, vector<1x8x128xf32>
    %252 = vector.shape_cast %251 : vector<1x8x128xf32> to vector<8x128xf32>
    %253 = vector.broadcast %239 : f32 to vector<8x128xf32>
    %254 = arith.mulf %253, %252 : vector<8x128xf32>
    %255 = arith.addf %250, %254 : vector<8x128xf32>
    %256 = vector.broadcast %240 : f32 to vector<8x128xf32>
    %257 = arith.mulf %255, %256 : vector<8x128xf32>
    %cst_33 = arith.constant dense<0.000000e+00> : vector<8x128xf32>
    %258 = tpu.matmul %0, %257, %cst_33 {dimension_numbers = #tpu.dot_dimension_numbers<[1], [0], [0], [1], [0, 0, 1, 1], [], []>} : vector<8x8xf32>, vector<8x128xf32>, vector<8x128xf32> -> vector<8x128xf32>
    %259 = vector.broadcast %1 : vector<8x1xf32> to vector<8x128xf32>
    %260 = arith.addf %258, %259 : vector<8x128xf32>
    %261 = vector.broadcast %241 : f32 to vector<8x128xf32>
    %262 = arith.mulf %261, %255 : vector<8x128xf32>
    %263 = vector.broadcast %242 : f32 to vector<8x128xf32>
    %264 = arith.mulf %263, %260 : vector<8x128xf32>
    %265 = arith.subf %262, %264 : vector<8x128xf32>
    %266 = vector.broadcast %243 : f32 to vector<8x128xf32>
    %267 = arith.mulf %266, %265 : vector<8x128xf32>
    %268 = arith.addf %255, %267 : vector<8x128xf32>
    %269 = vector.broadcast %244 : f32 to vector<8x128xf32>
    %270 = arith.mulf %268, %269 : vector<8x128xf32>
    %cst_34 = arith.constant dense<0.000000e+00> : vector<8x128xf32>
    %271 = tpu.matmul %0, %270, %cst_34 {dimension_numbers = #tpu.dot_dimension_numbers<[1], [0], [0], [1], [0, 0, 1, 1], [], []>} : vector<8x8xf32>, vector<8x128xf32>, vector<8x128xf32> -> vector<8x128xf32>
    %272 = vector.broadcast %1 : vector<8x1xf32> to vector<8x128xf32>
    %273 = arith.addf %271, %272 : vector<8x128xf32>
    %274 = vector.broadcast %245 : f32 to vector<8x128xf32>
    %275 = arith.mulf %274, %268 : vector<8x128xf32>
    %276 = vector.broadcast %246 : f32 to vector<8x128xf32>
    %277 = arith.mulf %276, %273 : vector<8x128xf32>
    %278 = arith.subf %275, %277 : vector<8x128xf32>
    %279 = vector.broadcast %247 : f32 to vector<8x128xf32>
    %280 = arith.mulf %279, %265 : vector<8x128xf32>
    %281 = arith.addf %255, %280 : vector<8x128xf32>
    %282 = vector.broadcast %248 : f32 to vector<8x128xf32>
    %283 = arith.mulf %282, %278 : vector<8x128xf32>
    %284 = arith.addf %281, %283 : vector<8x128xf32>
    %c66 = arith.constant 66 : index
    %285 = memref.load %arg1[%c66] : memref<88xf32, #tpu.memory_space<smem>>
    %c67 = arith.constant 67 : index
    %286 = memref.load %arg1[%c67] : memref<88xf32, #tpu.memory_space<smem>>
    %c68 = arith.constant 68 : index
    %287 = memref.load %arg1[%c68] : memref<88xf32, #tpu.memory_space<smem>>
    %c69 = arith.constant 69 : index
    %288 = memref.load %arg1[%c69] : memref<88xf32, #tpu.memory_space<smem>>
    %c70 = arith.constant 70 : index
    %289 = memref.load %arg1[%c70] : memref<88xf32, #tpu.memory_space<smem>>
    %c71 = arith.constant 71 : index
    %290 = memref.load %arg1[%c71] : memref<88xf32, #tpu.memory_space<smem>>
    %c72 = arith.constant 72 : index
    %291 = memref.load %arg1[%c72] : memref<88xf32, #tpu.memory_space<smem>>
    %c73 = arith.constant 73 : index
    %292 = memref.load %arg1[%c73] : memref<88xf32, #tpu.memory_space<smem>>
    %c74 = arith.constant 74 : index
    %293 = memref.load %arg1[%c74] : memref<88xf32, #tpu.memory_space<smem>>
    %c75 = arith.constant 75 : index
    %294 = memref.load %arg1[%c75] : memref<88xf32, #tpu.memory_space<smem>>
    %c76 = arith.constant 76 : index
    %295 = memref.load %arg1[%c76] : memref<88xf32, #tpu.memory_space<smem>>
    %296 = vector.broadcast %285 : f32 to vector<8x128xf32>
    %297 = arith.mulf %296, %284 : vector<8x128xf32>
    %c6_35 = arith.constant 6 : index
    %c0_36 = arith.constant 0 : index
    %c0_37 = arith.constant 0 : index
    %298 = vector.load %arg5[%c6_35, %c0_36, %c0_37] : memref<8x8x128xf32, #tpu.memory_space<vmem>>, vector<1x8x128xf32>
    %299 = vector.shape_cast %298 : vector<1x8x128xf32> to vector<8x128xf32>
    %300 = vector.broadcast %286 : f32 to vector<8x128xf32>
    %301 = arith.mulf %300, %299 : vector<8x128xf32>
    %302 = arith.addf %297, %301 : vector<8x128xf32>
    %303 = vector.broadcast %287 : f32 to vector<8x128xf32>
    %304 = arith.mulf %302, %303 : vector<8x128xf32>
    %cst_38 = arith.constant dense<0.000000e+00> : vector<8x128xf32>
    %305 = tpu.matmul %0, %304, %cst_38 {dimension_numbers = #tpu.dot_dimension_numbers<[1], [0], [0], [1], [0, 0, 1, 1], [], []>} : vector<8x8xf32>, vector<8x128xf32>, vector<8x128xf32> -> vector<8x128xf32>
    %306 = vector.broadcast %1 : vector<8x1xf32> to vector<8x128xf32>
    %307 = arith.addf %305, %306 : vector<8x128xf32>
    %308 = vector.broadcast %288 : f32 to vector<8x128xf32>
    %309 = arith.mulf %308, %302 : vector<8x128xf32>
    %310 = vector.broadcast %289 : f32 to vector<8x128xf32>
    %311 = arith.mulf %310, %307 : vector<8x128xf32>
    %312 = arith.subf %309, %311 : vector<8x128xf32>
    %313 = vector.broadcast %290 : f32 to vector<8x128xf32>
    %314 = arith.mulf %313, %312 : vector<8x128xf32>
    %315 = arith.addf %302, %314 : vector<8x128xf32>
    %316 = vector.broadcast %291 : f32 to vector<8x128xf32>
    %317 = arith.mulf %315, %316 : vector<8x128xf32>
    %cst_39 = arith.constant dense<0.000000e+00> : vector<8x128xf32>
    %318 = tpu.matmul %0, %317, %cst_39 {dimension_numbers = #tpu.dot_dimension_numbers<[1], [0], [0], [1], [0, 0, 1, 1], [], []>} : vector<8x8xf32>, vector<8x128xf32>, vector<8x128xf32> -> vector<8x128xf32>
    %319 = vector.broadcast %1 : vector<8x1xf32> to vector<8x128xf32>
    %320 = arith.addf %318, %319 : vector<8x128xf32>
    %321 = vector.broadcast %292 : f32 to vector<8x128xf32>
    %322 = arith.mulf %321, %315 : vector<8x128xf32>
    %323 = vector.broadcast %293 : f32 to vector<8x128xf32>
    %324 = arith.mulf %323, %320 : vector<8x128xf32>
    %325 = arith.subf %322, %324 : vector<8x128xf32>
    %326 = vector.broadcast %294 : f32 to vector<8x128xf32>
    %327 = arith.mulf %326, %312 : vector<8x128xf32>
    %328 = arith.addf %302, %327 : vector<8x128xf32>
    %329 = vector.broadcast %295 : f32 to vector<8x128xf32>
    %330 = arith.mulf %329, %325 : vector<8x128xf32>
    %331 = arith.addf %328, %330 : vector<8x128xf32>
    %c77 = arith.constant 77 : index
    %332 = memref.load %arg1[%c77] : memref<88xf32, #tpu.memory_space<smem>>
    %c78 = arith.constant 78 : index
    %333 = memref.load %arg1[%c78] : memref<88xf32, #tpu.memory_space<smem>>
    %c79 = arith.constant 79 : index
    %334 = memref.load %arg1[%c79] : memref<88xf32, #tpu.memory_space<smem>>
    %c80 = arith.constant 80 : index
    %335 = memref.load %arg1[%c80] : memref<88xf32, #tpu.memory_space<smem>>
    %c81 = arith.constant 81 : index
    %336 = memref.load %arg1[%c81] : memref<88xf32, #tpu.memory_space<smem>>
    %c86 = arith.constant 86 : index
    %337 = memref.load %arg1[%c86] : memref<88xf32, #tpu.memory_space<smem>>
    %338 = vector.broadcast %332 : f32 to vector<8x128xf32>
    %339 = arith.mulf %338, %331 : vector<8x128xf32>
    %c7_40 = arith.constant 7 : index
    %c0_41 = arith.constant 0 : index
    %c0_42 = arith.constant 0 : index
    %340 = vector.load %arg5[%c7_40, %c0_41, %c0_42] : memref<8x8x128xf32, #tpu.memory_space<vmem>>, vector<1x8x128xf32>
    %341 = vector.shape_cast %340 : vector<1x8x128xf32> to vector<8x128xf32>
    %342 = vector.broadcast %333 : f32 to vector<8x128xf32>
    %343 = arith.mulf %342, %341 : vector<8x128xf32>
    %344 = arith.addf %339, %343 : vector<8x128xf32>
    %345 = vector.broadcast %334 : f32 to vector<8x128xf32>
    %346 = arith.mulf %344, %345 : vector<8x128xf32>
    %cst_43 = arith.constant dense<0.000000e+00> : vector<8x128xf32>
    %347 = tpu.matmul %0, %346, %cst_43 {dimension_numbers = #tpu.dot_dimension_numbers<[1], [0], [0], [1], [0, 0, 1, 1], [], []>} : vector<8x8xf32>, vector<8x128xf32>, vector<8x128xf32> -> vector<8x128xf32>
    %348 = vector.broadcast %1 : vector<8x1xf32> to vector<8x128xf32>
    %349 = arith.addf %347, %348 : vector<8x128xf32>
    %350 = vector.broadcast %335 : f32 to vector<8x128xf32>
    %351 = arith.mulf %350, %344 : vector<8x128xf32>
    %352 = vector.broadcast %336 : f32 to vector<8x128xf32>
    %353 = arith.mulf %352, %349 : vector<8x128xf32>
    %354 = arith.subf %351, %353 : vector<8x128xf32>
    %355 = vector.broadcast %337 : f32 to vector<8x128xf32>
    %356 = arith.mulf %355, %354 : vector<8x128xf32>
    %357 = arith.addf %344, %356 : vector<8x128xf32>
    %c0_44 = arith.constant 0 : index
    %c0_45 = arith.constant 0 : index
    %358 = vector.load %arg6[%c0_44, %c0_45] : memref<8x128xf32, #tpu.memory_space<vmem>>, vector<8x128xf32>
    tpu.vector_store %arg6[%c0_44, %c0_45], %357 {strides = array<i32>} : memref<8x128xf32, #tpu.memory_space<vmem>>, vector<8x128xf32>,
    return
  }
  func.func @transform_0(%arg0: i32) -> i32 {
    %c0_i32 = arith.constant 0 : i32
    %c0_i32_0 = arith.constant 0 : i32
    return %c0_i32 : i32
  }
  func.func @transform_1(%arg0: i32) -> (i32, i32) {
    %c0_i32 = arith.constant 0 : i32
    %c0_i32_0 = arith.constant 0 : i32
    %c0_i32_1 = arith.constant 0 : i32
    return %c0_i32, %c0_i32_0 : i32, i32
  }
  func.func @transform_2(%arg0: i32) -> (i32, i32) {
    %c0_i32 = arith.constant 0 : i32
    %c0_i32_0 = arith.constant 0 : i32
    %c0_i32_1 = arith.constant 0 : i32
    return %c0_i32, %c0_i32_0 : i32, i32
  }
  func.func @transform_3(%arg0: i32) -> (i32, i32) {
    %c0_i32 = arith.constant 0 : i32
    %c0_i32_0 = arith.constant 0 : i32
    return %c0_i32, %arg0 : i32, i32
  }
  func.func @transform_4(%arg0: i32) -> (i32, i32, i32) {
    %c0_i32 = arith.constant 0 : i32
    %c0_i32_0 = arith.constant 0 : i32
    %c0_i32_1 = arith.constant 0 : i32
    return %c0_i32, %c0_i32_0, %arg0 : i32, i32, i32
  }
  func.func @transform_5(%arg0: i32) -> (i32, i32) {
    %c0_i32 = arith.constant 0 : i32
    %c0_i32_0 = arith.constant 0 : i32
    return %c0_i32, %arg0 : i32, i32
  }
}

</mosaic_0001>

<llo_original>
// kernel: tile.6
$region0: #{tile.6}
  #allocation0 [shape = 's32[1]{0}', space=sflag, size = 0x4, scoped, tag = 'scoped memory for tile.6']
  %s0 = inlined_call_operand.vmem [shape: f32[4], index: 0, kind: input, shape index: {}]
  %s1 = inlined_call_operand.vmem [shape: f32[2,4], index: 1, kind: output, shape index: {}]
  // Predicated region
  $region2: #{tile.6} parent=0 // pred_check
    _
  $region3: #{tile.6} parent=0 // pred_check_branch
    %3 = sbr.rel (0) target = $region5
  $region4: #{tile.6} parent=0 // pred_region
    _
  $region5: #{tile.6} parent=0 // pred_fallthru
    _
  %v4 = vld [vmem:[%s0] ss:$0 sm:$0xff]
  %5 = vst [vmem:[%s1] sm:$0x3] %v4

// kernel: tile.0
$region0: #{tile.0}
  %s0 = inlined_call_operand.vmem [shape: f32[2,4], index: 0, kind: input, shape index: {}]
  %s1 = inlined_call_operand.vmem [shape: f32[8,1], index: 1, kind: output, shape index: {}]
  $region1: #{tile.0} parent=0
    #allocation0 [shape = 'u8[4096]{0}', space=vmem, size = 0x1000, scoped, tag = 'scoped mem for input reshape']
    %s3 = sshllo.u32 0, 2
    %v4 = vld [vmem:[%s0] sm:%s3]
    %5 = vst [vmem:[#allocation0] sm:%s3] %v4
    %v6 = vld [vmem:[#allocation0] sm:$0x3]
    %vm7 = vcmask 7168
    %8 = vst.msk [vmem:[%s1] ss:$4 sm:$0x3] %vm7, %v6
    %v9 = vld [vmem:[#allocation0] sm:$0x3]
    %10 = vrot.lane.b32.xlu0 %v9, 127
    %v11 = vpop.permute.xlu0 %10
    %vm12 = vcmask 7168
    %s13 = scalar_lea.vmem %s1, 1
    %14 = vst.msk [vmem:[%s13] ss:$4 sm:$0x3] %vm12, %v11
    %v15 = vld [vmem:[#allocation0] sm:$0x3]
    %16 = vrot.lane.b32.xlu0 %v15, 126
    %v17 = vpop.permute.xlu0 %16
    %vm18 = vcmask 7168
    %s19 = scalar_lea.vmem %s1, 2
    %20 = vst.msk [vmem:[%s19] ss:$4 sm:$0x3] %vm18, %v17
    %v21 = vld [vmem:[#allocation0] sm:$0x3]
    %22 = vrot.lane.b32.xlu0 %v21, 125
    %v23 = vpop.permute.xlu0 %22
    %vm24 = vcmask 7168
    %s25 = scalar_lea.vmem %s1, 3
    %26 = vst.msk [vmem:[%s25] ss:$4 sm:$0x3] %vm24, %v23

// kernel: vp_sample_pallas.1
$region0: #{vp_sample_pallas.1}
  #allocation0 [shape = 'u32[]', space=smem, size = 0x4, offset = 0x4, fixed_abs, tag = 'smem constant byte address 0x4 - core index']
  #allocation1 [shape = 'u32[144,128]{1,0:T(1,128)}', space=vmem, size = 0x12000, scoped, tag = 'internal scratch']
  %s0 = inlined_call_operand.vmem [shape: f32[88], index: 0, kind: input, shape index: {}]
  %s1 = inlined_call_operand.vmem [shape: f32[8,8], index: 1, kind: input, shape index: {}]
  %s2 = inlined_call_operand.vmem [shape: f32[8,1], index: 2, kind: input, shape index: {}]
  %s3 = inlined_call_operand.vmem [shape: f32[8,256], index: 3, kind: input, shape index: {}]
  %s4 = inlined_call_operand.vmem [shape: f32[8,8,256], index: 4, kind: input, shape index: {}]
  %s5 = inlined_call_operand.vmem [shape: f32[8,256], index: 5, kind: output, shape index: {}]
  %s6 = sld [smem:[#allocation0]]
  $region95: #{vp_sample_pallas.1} parent=0
    _
  %s8 = ssub.s32 1, %s6
  %s9 = scalar_select 0, %s8, %s6
  $region1: #{vp_sample_pallas.1} parent=0
    #allocation2 [shape = 'u8[512]{0}', space=smem, size = 0x200, scoped, tag = 'input window, operand 0, single buffered']
    #allocation3 [shape = 's32[2]{0}', space=sflag, size = 0x8, scoped, tag = 'scoped memory for vp_sample_pallas.1']
    #allocation4 [shape = 'u8[65536]{0}', space=vmem, size = 0x10000, scoped, tag = 'input window, operand 4']
    %10 = vsyncpa [#allocation3], 0
    loop: start=0, step=1, limit=4
    $region2: #{vp_sample_pallas.1} parent=1 // loop_pre_header
      _
    $region3: #{vp_sample_pallas.1} parent=1 // loop_header
      %s12 = sphi 0, %s16
      %p13 = scmp.ge.s32.totalorder %s12, 4
      %s20 = sphi 0, %s20
      %s22 = sphi 0, %s20
      %s23 = sphi 0, %s22
      %s37 = sphi 0, %s23
      %s41 = sphi 0, %s41
      %s43 = sphi 0, %s41
      %s44 = sphi 0, %s43
      %s58 = sphi 0, %s44
      %s62 = sphi 0, %s62
      %s64 = sphi 0, %s62
      %s65 = sphi 0, %s64
      %s79 = sphi 0, %s65
      %s85 = sphi 0, %s87
      %s88 = sphi 0, %s85
      %s89 = sphi 0, %s88
      %s105 = sphi 0, %s89
      %s111 = sphi 0, %s113
      %s114 = sphi 0, %s111
      %s115 = sphi 0, %s114
      %s131 = sphi 0, %s115
      %s137 = sphi 0, %s139
      %s140 = sphi 0, %s137
      %s141 = sphi 0, %s140
      %s157 = sphi 0, %s141
    $region4: #{vp_sample_pallas.1} parent=1 // loop_header_branch
      %15 = sbr.rel (%p13) target = $region8
    $region5: #{vp_sample_pallas.1} parent=1 // loop_body
      %s17 = ssub.s32 %s12, 1
      %s18 = ssub.s32 %s12, 2
      %s19 = sadd.s32 %s12, 1
      %s21 = sadd.s32 %s20, 1
      %p24 = scmp.eq.s32.totalorder %s12, 1
      %p25 = scmp.ne.s32.totalorder %s20, %s22
      %p26 = scmp.eq.s32.totalorder %s12, 0
      %p27 = por %p25, %p26
      %p28 = scmp.ne.s32.totalorder %s20, %s22
      %p29 = scmp.eq.s32.totalorder %s17, 1
      %p30 = por %p28, %p29
      %p31 = scmp.ne.s32.totalorder %s22, %s23
      %p32 = scmp.eq.s32.totalorder %s17, 0
      %p33 = por %p31, %p32
      %p34 = scmp.ne.s32.totalorder %s22, %s23
      %p35 = scmp.eq.s32.totalorder %s18, 1
      %p36 = por %p34, %p35
      %p38 = scmp.ne.s32.totalorder %s23, %s37
      %p39 = scmp.eq.s32.totalorder %s18, 0
      %p40 = por %p38, %p39
      %s42 = sadd.s32 %s41, 1
      %p45 = scmp.eq.s32.totalorder %s12, 1
      %p46 = scmp.ne.s32.totalorder %s41, %s43
      %p47 = scmp.eq.s32.totalorder %s12, 0
      %p48 = por %p46, %p47
      %p49 = scmp.ne.s32.totalorder %s41, %s43
      %p50 = scmp.eq.s32.totalorder %s17, 1
      %p51 = por %p49, %p50
      %p52 = scmp.ne.s32.totalorder %s43, %s44
      %p53 = scmp.eq.s32.totalorder %s17, 0
      %p54 = por %p52, %p53
      %p55 = scmp.ne.s32.totalorder %s43, %s44
      %p56 = scmp.eq.s32.totalorder %s18, 1
      %p57 = por %p55, %p56
      %p59 = scmp.ne.s32.totalorder %s44, %s58
      %p60 = scmp.eq.s32.totalorder %s18, 0
      %p61 = por %p59, %p60
      %s63 = sadd.s32 %s62, 1
      %p66 = scmp.eq.s32.totalorder %s12, 1
      %p67 = scmp.ne.s32.totalorder %s62, %s64
      %p68 = scmp.eq.s32.totalorder %s12, 0
      %p69 = por %p67, %p68
      %p70 = scmp.ne.s32.totalorder %s62, %s64
      %p71 = scmp.eq.s32.totalorder %s17, 1
      %p72 = por %p70, %p71
      %p73 = scmp.ne.s32.totalorder %s64, %s65
      %p74 = scmp.eq.s32.totalorder %s17, 0
      %p75 = por %p73, %p74
      %p76 = scmp.ne.s32.totalorder %s64, %s65
      %p77 = scmp.eq.s32.totalorder %s18, 1
      %p78 = por %p76, %p77
      %p80 = scmp.ne.s32.totalorder %s65, %s79
      %p81 = scmp.eq.s32.totalorder %s18, 0
      %p82 = por %p80, %p81
      %s83 = ssub.s32 %s12, %s19
      %p84 = scmp.eq.s32.totalorder %s83, 0
      %s86 = sadd.s32 %s85, 1
      %s87 = scalar_select %p84, %s85, %s86
      %p90 = pneg %p84
      %p91 = scmp.eq.s32.totalorder %s12, 1
      %p92 = por %p90, %p91
      %p93 = scmp.ne.s32.totalorder %s85, %s88
      %p94 = scmp.eq.s32.totalorder %s12, 0
      %p95 = por %p93, %p94
      %p96 = scmp.ne.s32.totalorder %s85, %s88
      %p97 = scmp.eq.s32.totalorder %s17, 1
      %p98 = por %p96, %p97
      %p99 = scmp.ne.s32.totalorder %s88, %s89
      %p100 = scmp.eq.s32.totalorder %s17, 0
      %p101 = por %p99, %p100
      %p102 = scmp.ne.s32.totalorder %s88, %s89
      %p103 = scmp.eq.s32.totalorder %s18, 1
      %p104 = por %p102, %p103
      %p106 = scmp.ne.s32.totalorder %s89, %s105
      %p107 = scmp.eq.s32.totalorder %s18, 0
      %p108 = por %p106, %p107
      %s109 = ssub.s32 %s12, %s19
      %p110 = scmp.eq.s32.totalorder %s109, 0
      %s112 = sadd.s32 %s111, 1
      %s113 = scalar_select %p110, %s111, %s112
      %p116 = pneg %p110
      %p117 = scmp.eq.s32.totalorder %s12, 1
      %p118 = por %p116, %p117
      %p119 = scmp.ne.s32.totalorder %s111, %s114
      %p120 = scmp.eq.s32.totalorder %s12, 0
      %p121 = por %p119, %p120
      %p122 = scmp.ne.s32.totalorder %s111, %s114
      %p123 = scmp.eq.s32.totalorder %s17, 1
      %p124 = por %p122, %p123
      %p125 = scmp.ne.s32.totalorder %s114, %s115
      %p126 = scmp.eq.s32.totalorder %s17, 0
      %p127 = por %p125, %p126
      %p128 = scmp.ne.s32.totalorder %s114, %s115
      %p129 = scmp.eq.s32.totalorder %s18, 1
      %p130 = por %p128, %p129
      %p132 = scmp.ne.s32.totalorder %s115, %s131
      %p133 = scmp.eq.s32.totalorder %s18, 0
      %p134 = por %p132, %p133
      %s135 = ssub.s32 %s12, %s19
      %p136 = scmp.eq.s32.totalorder %s135, 0
      %s138 = sadd.s32 %s137, 1
      %s139 = scalar_select %p136, %s137, %s138
      %p142 = pneg %p136
      %p143 = scmp.eq.s32.totalorder %s12, 1
      %p144 = por %p142, %p143
      %p145 = scmp.ne.s32.totalorder %s137, %s140
      %p146 = scmp.eq.s32.totalorder %s12, 0
      %p147 = por %p145, %p146
      %p148 = scmp.ne.s32.totalorder %s137, %s140
      %p149 = scmp.eq.s32.totalorder %s17, 1
      %p150 = por %p148, %p149
      %p151 = scmp.ne.s32.totalorder %s140, %s141
      %p152 = scmp.eq.s32.totalorder %s17, 0
      %p153 = por %p151, %p152
      %p154 = scmp.ne.s32.totalorder %s140, %s141
      %p155 = scmp.eq.s32.totalorder %s18, 1
      %p156 = por %p154, %p155
      %p158 = scmp.ne.s32.totalorder %s141, %s157
      %p159 = scmp.eq.s32.totalorder %s18, 0
      %p160 = por %p158, %p159
      %p161 = scmp.le.s32.totalorder 1, %s12
      %p162 = scmp.lt.s32.totalorder %s12, 3
      %p163 = pnand %p161, %p162
      %p164 = pneg %p163
      // Predicated region
      $region9: #{vp_sample_pallas.1} parent=5 // pred_check
        _
      $region10: #{vp_sample_pallas.1} parent=5 // pred_check_branch
        %166 = sbr.rel (%p163) target = $region12
      $region11: #{vp_sample_pallas.1} parent=5 // pred_region
        %s167 = ssub.s32 %s12, 1
        // Predicated region
        $region13: #{vp_sample_pallas.1} parent=11 // pred_check
          %p168 = pneg %p33
        $region14: #{vp_sample_pallas.1} parent=11 // pred_check_branch
          %170 = sbr.rel (%p168) target = $region16
        $region15: #{vp_sample_pallas.1} parent=11 // pred_region
          %s172 = ssub.s32 16, 16
          %173 = vsyncadd [#allocation3], %s172
          %s175 = sshll.u32 %s0, 4
          %s176 = int_to_ptr.vmem [resolvable:$true] %s175
          %178 = dma.vmem_to_smem %s176, 16, [#allocation2], [#allocation3]
        $region16: #{vp_sample_pallas.1} parent=11 // pred_fallthru
          _
        // Predicated region
        $region17: #{vp_sample_pallas.1} parent=11 // pred_check
          %p179 = pneg %p54
        $region18: #{vp_sample_pallas.1} parent=11 // pred_check_branch
          %181 = sbr.rel (%p179) target = $region20
        $region19: #{vp_sample_pallas.1} parent=11 // pred_region
          _
        $region20: #{vp_sample_pallas.1} parent=11 // pred_fallthru
          _
        // Predicated region
        $region21: #{vp_sample_pallas.1} parent=11 // pred_check
          %p182 = pneg %p75
        $region22: #{vp_sample_pallas.1} parent=11 // pred_check_branch
          %184 = sbr.rel (%p182) target = $region24
        $region23: #{vp_sample_pallas.1} parent=11 // pred_region
          _
        $region24: #{vp_sample_pallas.1} parent=11 // pred_fallthru
          _
      $region12: #{vp_sample_pallas.1} parent=5 // pred_fallthru
        _
      %p185 = scmp.lt.s32.totalorder %s12, 2
      // Predicated region
      $region25: #{vp_sample_pallas.1} parent=5 // pred_check
        %p186 = pneg %p185
      $region26: #{vp_sample_pallas.1} parent=5 // pred_check_branch
        %188 = sbr.rel (%p186) target = $region28
      $region27: #{vp_sample_pallas.1} parent=5 // pred_region
        // Predicated region
        $region29: #{vp_sample_pallas.1} parent=27 // pred_check
          %p189 = pneg %p95
        $region30: #{vp_sample_pallas.1} parent=27 // pred_check_branch
          %191 = sbr.rel (%p189) target = $region32
        $region31: #{vp_sample_pallas.1} parent=27 // pred_region
          %p192 = scmp.lt.s32.totalorder %s12, 1
          %s193 = scalar_select %p192, %s12, 1
          %s194 = smul.addr %s193, 8
          %s195 = scalar_lea.vmem %s3, %s194
        $region32: #{vp_sample_pallas.1} parent=27 // pred_fallthru
          _
        // Predicated region
        $region33: #{vp_sample_pallas.1} parent=27 // pred_check
          %p196 = pneg %p121
        $region34: #{vp_sample_pallas.1} parent=27 // pred_check_branch
          %198 = sbr.rel (%p196) target = $region36
        $region35: #{vp_sample_pallas.1} parent=27 // pred_region
          %s199 = sand.u32 %s111, 1
          %s200 = sand.u32 %s111, 1
          %s201 = smul.addr %s200, 64
          %s202 = scalar_lea.vmem [#allocation4], %s201
          %s203 = smul.addr %s12, 8
          %s204 = scalar_lea.vmem %s4, %s203
          // Predicated region
          $region37: #{vp_sample_pallas.1} parent=35 // pred_check
            _
          $region38: #{vp_sample_pallas.1} parent=35 // pred_check_branch
            %206 = sbr.rel (0) target = $region40
          $region39: #{vp_sample_pallas.1} parent=35 // pred_region
            // Predicated region
            $region41: #{vp_sample_pallas.1} parent=39 // pred_check
              _
            $region42: #{vp_sample_pallas.1} parent=39 // pred_check_branch
              %208 = sbr.rel (0) target = $region44
            $region43: #{vp_sample_pallas.1} parent=39 // pred_region
              // Predicated region
              $region56: #{vp_sample_pallas.1} parent=43 // pred_check
                _
              $region57: #{vp_sample_pallas.1} parent=43 // pred_check_branch
                %237 = sbr.rel (0) target = $region59
              $region58: #{vp_sample_pallas.1} parent=43 // pred_region
                loop: start=0, step=1, limit=1
                $region60: #{vp_sample_pallas.1} parent=58 // loop_pre_header
                  _
                $region61: #{vp_sample_pallas.1} parent=58 // loop_header
                  %s239 = sphi 0, %s243
                  %p240 = scmp.ge.s32.totalorder %s239, 1
                  %s244 = sphi %s204, %s204
                  %s245 = sphi %s202, %s202
                $region62: #{vp_sample_pallas.1} parent=58 // loop_header_branch
                  %242 = sbr.rel (%p240) target = $region66
                $region63: #{vp_sample_pallas.1} parent=58 // loop_body
                  %v246 = vld [vmem:[%s244] sm:$0xff]
                  %247 = vst [vmem:[%s245] sm:$0xff] %v246
                  %v248 = vld [vmem:[%s244 + $0x10] sm:$0xff]
                  %249 = vst [vmem:[%s245 + $0x8] sm:$0xff] %v248
                  %v250 = vld [vmem:[%s244 + $0x20] sm:$0xff]
                  %251 = vst [vmem:[%s245 + $0x10] sm:$0xff] %v250
                  %v252 = vld [vmem:[%s244 + $0x30] sm:$0xff]
                  %253 = vst [vmem:[%s245 + $0x18] sm:$0xff] %v252
                  %v254 = vld [vmem:[%s244 + $0x40] sm:$0xff]
                  %255 = vst [vmem:[%s245 + $0x20] sm:$0xff] %v254
                  %v256 = vld [vmem:[%s244 + $0x50] sm:$0xff]
                  %257 = vst [vmem:[%s245 + $0x28] sm:$0xff] %v256
                  %v258 = vld [vmem:[%s244 + $0x60] sm:$0xff]
                  %259 = vst [vmem:[%s245 + $0x30] sm:$0xff] %v258
                  %v260 = vld [vmem:[%s244 + $0x70] sm:$0xff]
                  %261 = vst [vmem:[%s245 + $0x38] sm:$0xff] %v260
                $region64: #{vp_sample_pallas.1} parent=58 // loop_footer
                  %s243 = sadd.s32 1, %s239
                $region65: #{vp_sample_pallas.1} parent=58 // loop_footer_branch
                  %238 = sbr.rel target = $region61
                $region66: #{vp_sample_pallas.1} parent=58 // loop_exit
                  _
              $region59: #{vp_sample_pallas.1} parent=43 // pred_fallthru
                _
              // Predicated region
              $region67: #{vp_sample_pallas.1} parent=43 // pred_check
                _
              $region68: #{vp_sample_pallas.1} parent=43 // pred_check_branch
                %263 = sbr.rel target = $region70
              $region69: #{vp_sample_pallas.1} parent=43 // pred_region
                _
              $region70: #{vp_sample_pallas.1} parent=43 // pred_fallthru
                _
            $region44: #{vp_sample_pallas.1} parent=39 // pred_fallthru
              _
            // Predicated region
            $region45: #{vp_sample_pallas.1} parent=39 // pred_check
              _
            $region46: #{vp_sample_pallas.1} parent=39 // pred_check_branch
              %210 = sbr.rel target = $region48
            $region47: #{vp_sample_pallas.1} parent=39 // pred_region
              loop: start=0, step=1, limit=1
              $region49: #{vp_sample_pallas.1} parent=47 // loop_pre_header
                _
              $region50: #{vp_sample_pallas.1} parent=47 // loop_header
                %s213 = sphi 0, %s217
                %p214 = scmp.ge.s32.totalorder %s213, 1
                %s218 = sphi %s204, %s204
                %s219 = sphi %s202, %s202
              $region51: #{vp_sample_pallas.1} parent=47 // loop_header_branch
                %216 = sbr.rel (%p214) target = $region55
              $region52: #{vp_sample_pallas.1} parent=47 // loop_body
                %v220 = vld [vmem:[%s218] sm:$0xff]
                %221 = vst [vmem:[%s219] sm:$0xff] %v220
                %v222 = vld [vmem:[%s218 + $0x10] sm:$0xff]
                %223 = vst [vmem:[%s219 + $0x8] sm:$0xff] %v222
                %v224 = vld [vmem:[%s218 + $0x20] sm:$0xff]
                %225 = vst [vmem:[%s219 + $0x10] sm:$0xff] %v224
                %v226 = vld [vmem:[%s218 + $0x30] sm:$0xff]
                %227 = vst [vmem:[%s219 + $0x18] sm:$0xff] %v226
                %v228 = vld [vmem:[%s218 + $0x40] sm:$0xff]
                %229 = vst [vmem:[%s219 + $0x20] sm:$0xff] %v228
                %v230 = vld [vmem:[%s218 + $0x50] sm:$0xff]
                %231 = vst [vmem:[%s219 + $0x28] sm:$0xff] %v230
                %v232 = vld [vmem:[%s218 + $0x60] sm:$0xff]
                %233 = vst [vmem:[%s219 + $0x30] sm:$0xff] %v232
                %v234 = vld [vmem:[%s218 + $0x70] sm:$0xff]
                %235 = vst [vmem:[%s219 + $0x38] sm:$0xff] %v234
              $region53: #{vp_sample_pallas.1} parent=47 // loop_footer
                %s217 = sadd.s32 1, %s213
              $region54: #{vp_sample_pallas.1} parent=47 // loop_footer_branch
                %212 = sbr.rel target = $region50
              $region55: #{vp_sample_pallas.1} parent=47 // loop_exit
                _
            $region48: #{vp_sample_pallas.1} parent=39 // pred_fallthru
              _
          $region40: #{vp_sample_pallas.1} parent=35 // pred_fallthru
            _
          %264 = vnop
        $region36: #{vp_sample_pallas.1} parent=27 // pred_fallthru
          _
      $region28: #{vp_sample_pallas.1} parent=5 // pred_fallthru
        _
      %p265 = scmp.le.s32.totalorder 1, %s12
      %p266 = scmp.lt.s32.totalorder %s12, 3
      %p267 = pnand %p265, %p266
      %p268 = pneg %p267
      // Predicated region
      $region71: #{vp_sample_pallas.1} parent=5 // pred_check
        _
      $region72: #{vp_sample_pallas.1} parent=5 // pred_check_branch
        %270 = sbr.rel (%p267) target = $region74
      $region73: #{vp_sample_pallas.1} parent=5 // pred_region
        %s271 = ssub.s32 %s12, 1
        // Predicated region
        $region75: #{vp_sample_pallas.1} parent=73 // pred_check
          %p272 = pneg %p33
        $region76: #{vp_sample_pallas.1} parent=73 // pred_check_branch
          %274 = sbr.rel (%p272) target = $region78
        $region77: #{vp_sample_pallas.1} parent=73 // pred_region
          %275 = dma.done [#allocation3], 16
        $region78: #{vp_sample_pallas.1} parent=73 // pred_fallthru
          _
        %s276 = sand.u32 %s114, 1
        %s277 = sand.u32 %s114, 1
        %s278 = smul.addr %s277, 64
        %s279 = scalar_lea.vmem [#allocation4], %s278
        // Predicated region
        $region79: #{vp_sample_pallas.1} parent=73 // pred_check
          %p280 = pneg %p127
        $region80: #{vp_sample_pallas.1} parent=73 // pred_check_branch
          %282 = sbr.rel (%p280) target = $region82
        $region81: #{vp_sample_pallas.1} parent=73 // pred_region
          _
        $region82: #{vp_sample_pallas.1} parent=73 // pred_fallthru
          _
        %283 = sfence
        %p284 = pneg %p33
        %p285 = pneg %p30
        %p286 = pneg %p54
        %p287 = pneg %p51
        %p288 = pneg %p75
        %p289 = pneg %p72
        %p290 = scmp.lt.s32.totalorder %s17, 1
        %s291 = scalar_select %p290, %s17, 1
        %s292 = smul.addr %s291, 8
        %s293 = scalar_lea.vmem %s3, %s292
        %p294 = pneg %p101
        %p295 = pneg %p98
        %s296 = sand.u32 %s114, 1
        %s297 = sand.u32 %s114, 1
        %s298 = smul.addr %s297, 64
        %s299 = scalar_lea.vmem [#allocation4], %s298
        %p300 = pneg %p127
        %p301 = pneg %p124
        %p302 = pneg %p153
        %p303 = pneg %p150
        %p304 = scmp.lt.s32.totalorder %s17, 1
        %s305 = scalar_select %p304, %s17, 1
        %s306 = smul.addr %s305, 8
        %s307 = scalar_lea.vmem %s5, %s306
        %p308 = scmp.lt.s32.totalorder %s17, 1
        %s309 = scalar_select %p308, %s17, 1
        %s310 = smul.addr %s309, 8
        %s311 = scalar_lea.vmem %s3, %s310
        %p312 = scmp.lt.s32.totalorder %s17, 1
        %s313 = scalar_select %p312, %s17, 1
        %s314 = smul.addr %s313, 8
        %s315 = scalar_lea.vmem %s5, %s314
        %v316 = vld [vmem:[%s1] sm:$0xff]
        %v317 = vld [vmem:[%s2] sm:$0xff]
        %v318 = vld [vmem:[%s311] sm:$0xff]
        %s319 = sld [smem:[#allocation2]]
        %s320 = sld [smem:[#allocation2 + $0x1]]
        %s321 = sld [smem:[#allocation2 + $0x2]]
        %s322 = sld [smem:[#allocation2 + $0x3]]
        %s323 = sld [smem:[#allocation2 + $0x4]]
        %s324 = sld [smem:[#allocation2 + $0x5]]
        %s325 = sld [smem:[#allocation2 + $0x6]]
        %s326 = sld [smem:[#allocation2 + $0x7]]
        %s327 = sld [smem:[#allocation2 + $0x8]]
        %s328 = sld [smem:[#allocation2 + $0x9]]
        %s329 = sld [smem:[#allocation2 + $0xa]]
        %v330 = vstv %s319
        %v331 = vmul.f32 %v330, %v318
        %v332 = vld [vmem:[%s279] sm:$0xff]
        %v333 = vstv %s320
        %v334 = vmul.f32 %v333, %v332
        %v335 = vadd.f32 %v331, %v334
        %v336 = vstv %s321
        %v337 = vmul.f32 %v335, %v336
        %339 = vset.pattern.permute.xlu0 0
        %340 = vperm.xlu0 %339, %v317
        %v341 = vpop.permute.xlu0 %340
        %vm343 = vcmask 64512
        %v345 = vsel %vm343, %v316, 0
        %347 = vmatprep.subr.mxu0 0.0
        %348 = vmatpush1.msra.mxu0 %v337
        %349 = vmatprep.subr.mxu0 0.0
        %350 = vmatpush1.msra.mxu0 0.0
        %351 = vmatprep.subr.mxu0 0.0
        %352 = vmatpush1.msra.mxu0 0.0
        %353 = vmatprep.subr.mxu0 0.0
        %354 = vmatpush1.msra.mxu0 0.0
        %355 = vmatprep.subr.mxu0 0.0
        %356 = vmatpush1.msra.mxu0 0.0
        %357 = vmatprep.subr.mxu0 0.0
        %358 = vmatpush1.msra.mxu0 0.0
        %359 = vmatprep.subr.mxu0 0.0
        %360 = vmatpush1.msra.mxu0 0.0
        %361 = vmatprep.subr.mxu0 0.0
        %362 = vmatpush1.msra.mxu0 0.0
        %363 = vmatprep.subr.mxu0 0.0
        %364 = vmatpush1.msra.mxu0 0.0
        %365 = vmatprep.subr.mxu0 0.0
        %366 = vmatpush1.msra.mxu0 0.0
        %367 = vmatprep.subr.mxu0 0.0
        %368 = vmatpush1.msra.mxu0 0.0
        %369 = vmatprep.subr.mxu0 0.0
        %370 = vmatpush1.msra.mxu0 0.0
        %371 = vmatprep.subr.mxu0 0.0
        %372 = vmatpush1.msra.mxu0 0.0
        %373 = vmatprep.subr.mxu0 0.0
        %374 = vmatpush1.msra.mxu0 0.0
        %375 = vmatprep.subr.mxu0 0.0
        %376 = vmatpush1.msra.mxu0 0.0
        %377 = vmatprep.subr.mxu0 0.0
        %378 = vmatpush1.msra.mxu0 0.0
        %379 = vmatprep.subr.mxu0 0.0
        %380 = vmatpush1.msra.mxu0 0.0
        %381 = vmatprep.subr.mxu0 0.0
        %382 = vmatpush1.msra.mxu0 0.0
        %383 = vmatprep.subr.mxu0 0.0
        %384 = vmatpush1.msra.mxu0 0.0
        %385 = vmatprep.subr.mxu0 0.0
        %386 = vmatpush1.msra.mxu0 0.0
        %387 = vmatprep.subr.mxu0 0.0
        %388 = vmatpush1.msra.mxu0 0.0
        %389 = vmatprep.subr.mxu0 0.0
        %390 = vmatpush1.msra.mxu0 0.0
        %391 = vmatprep.subr.mxu0 0.0
        %392 = vmatpush1.msra.mxu0 0.0
        %393 = vmatprep.subr.mxu0 0.0
        %394 = vmatpush1.msra.mxu0 0.0
        %395 = vmatprep.subr.mxu0 0.0
        %396 = vmatpush1.msra.mxu0 0.0
        %397 = vmatprep.subr.mxu0 0.0
        %398 = vmatpush1.msra.mxu0 0.0
        %399 = vmatprep.subr.mxu0 0.0
        %400 = vmatpush1.msra.mxu0 0.0
        %401 = vmatprep.subr.mxu0 0.0
        %402 = vmatpush1.msra.mxu0 0.0
        %403 = vmatprep.subr.mxu0 0.0
        %404 = vmatpush1.msra.mxu0 0.0
        %405 = vmatprep.subr.mxu0 0.0
        %406 = vmatpush1.msra.mxu0 0.0
        %407 = vmatprep.subr.mxu0 0.0
        %408 = vmatpush1.msra.mxu0 0.0
        %409 = vmatprep.subr.mxu0 0.0
        %410 = vmatpush1.msra.mxu0 0.0
        %411 = vmatprep.mubr.f32.mxu0 0.0
        %412 = vmatmul.mubr.f32.gmra.mrb[0].mxu0 %v345
        %v413 = vpop.f32.mrb[0].mxu0
        %v414 = vadd.f32 %v341, %v413
        %v415 = vpop.f32.mrb[0].mxu0
        %416 = vdwg.mxu0
        %v417 = vstv %s322
        %v418 = vmul.f32 %v417, %v335
        %v419 = vstv %s323
        %v420 = vmul.f32 %v419, %v414
        %v421 = vsub.f32 %v418, %v420
        %v422 = vstv %s324
        %v423 = vmul.f32 %v422, %v421
        %v424 = vadd.f32 %v335, %v423
        %v425 = vstv %s325
        %v426 = vmul.f32 %v424, %v425
        %427 = vmatprep.subr.mxu0 0.0
        %428 = vmatpush1.msra.mxu0 %v426
        %429 = vmatprep.subr.mxu0 0.0
        %430 = vmatpush1.msra.mxu0 0.0
        %431 = vmatprep.subr.mxu0 0.0
        %432 = vmatpush1.msra.mxu0 0.0
        %433 = vmatprep.subr.mxu0 0.0
        %434 = vmatpush1.msra.mxu0 0.0
        %435 = vmatprep.subr.mxu0 0.0
        %436 = vmatpush1.msra.mxu0 0.0
        %437 = vmatprep.subr.mxu0 0.0
        %438 = vmatpush1.msra.mxu0 0.0
        %439 = vmatprep.subr.mxu0 0.0
        %440 = vmatpush1.msra.mxu0 0.0
        %441 = vmatprep.subr.mxu0 0.0
        %442 = vmatpush1.msra.mxu0 0.0
        %443 = vmatprep.subr.mxu0 0.0
        %444 = vmatpush1.msra.mxu0 0.0
        %445 = vmatprep.subr.mxu0 0.0
        %446 = vmatpush1.msra.mxu0 0.0
        %447 = vmatprep.subr.mxu0 0.0
        %448 = vmatpush1.msra.mxu0 0.0
        %449 = vmatprep.subr.mxu0 0.0
        %450 = vmatpush1.msra.mxu0 0.0
        %451 = vmatprep.subr.mxu0 0.0
        %452 = vmatpush1.msra.mxu0 0.0
        %453 = vmatprep.subr.mxu0 0.0
        %454 = vmatpush1.msra.mxu0 0.0
        %455 = vmatprep.subr.mxu0 0.0
        %456 = vmatpush1.msra.mxu0 0.0
        %457 = vmatprep.subr.mxu0 0.0
        %458 = vmatpush1.msra.mxu0 0.0
        %459 = vmatprep.subr.mxu0 0.0
        %460 = vmatpush1.msra.mxu0 0.0
        %461 = vmatprep.subr.mxu0 0.0
        %462 = vmatpush1.msra.mxu0 0.0
        %463 = vmatprep.subr.mxu0 0.0
        %464 = vmatpush1.msra.mxu0 0.0
        %465 = vmatprep.subr.mxu0 0.0
        %466 = vmatpush1.msra.mxu0 0.0
        %467 = vmatprep.subr.mxu0 0.0
        %468 = vmatpush1.msra.mxu0 0.0
        %469 = vmatprep.subr.mxu0 0.0
        %470 = vmatpush1.msra.mxu0 0.0
        %471 = vmatprep.subr.mxu0 0.0
        %472 = vmatpush1.msra.mxu0 0.0
        %473 = vmatprep.subr.mxu0 0.0
        %474 = vmatpush1.msra.mxu0 0.0
        %475 = vmatprep.subr.mxu0 0.0
        %476 = vmatpush1.msra.mxu0 0.0
        %477 = vmatprep.subr.mxu0 0.0
        %478 = vmatpush1.msra.mxu0 0.0
        %479 = vmatprep.subr.mxu0 0.0
        %480 = vmatpush1.msra.mxu0 0.0
        %481 = vmatprep.subr.mxu0 0.0
        %482 = vmatpush1.msra.mxu0 0.0
        %483 = vmatprep.subr.mxu0 0.0
        %484 = vmatpush1.msra.mxu0 0.0
        %485 = vmatprep.subr.mxu0 0.0
        %486 = vmatpush1.msra.mxu0 0.0
        %487 = vmatprep.subr.mxu0 0.0
        %488 = vmatpush1.msra.mxu0 0.0
        %489 = vmatprep.subr.mxu0 0.0
        %490 = vmatpush1.msra.mxu0 0.0
        %491 = vmatprep.mubr.f32.mxu0 0.0
        %492 = vmatmul.mubr.f32.gmra.mrb[0].mxu0 %v345
        %v493 = vpop.f32.mrb[0].mxu0
        %v494 = vadd.f32 %v341, %v493
        %v495 = vpop.f32.mrb[0].mxu0
        %496 = vdwg.mxu0
        %v497 = vstv %s326
        %v498 = vmul.f32 %v497, %v424
        %v499 = vstv %s327
        %v500 = vmul.f32 %v499, %v494
        %v501 = vsub.f32 %v498, %v500
        %v502 = vstv %s328
        %v503 = vmul.f32 %v502, %v421
        %v504 = vadd.f32 %v335, %v503
        %v505 = vstv %s329
        %v506 = vmul.f32 %v505, %v501
        %v507 = vadd.f32 %v504, %v506
        %s508 = sld [smem:[#allocation2 + $0xb]]
        %s509 = sld [smem:[#allocation2 + $0xc]]
        %s510 = sld [smem:[#allocation2 + $0xd]]
        %s511 = sld [smem:[#allocation2 + $0xe]]
        %s512 = sld [smem:[#allocation2 + $0xf]]
        %s513 = sld [smem:[#allocation2 + $0x10]]
        %s514 = sld [smem:[#allocation2 + $0x11]]
        %s515 = sld [smem:[#allocation2 + $0x12]]
        %s516 = sld [smem:[#allocation2 + $0x13]]
        %s517 = sld [smem:[#allocation2 + $0x14]]
        %s518 = sld [smem:[#allocation2 + $0x15]]
        %v519 = vstv %s508
        %v520 = vmul.f32 %v519, %v507
        %s521 = scalar_lea.vmem %s279, 8 [#allocation4]
        %v522 = vld [vmem:[%s521] sm:$0xff]
        %v523 = vstv %s509
        %v524 = vmul.f32 %v523, %v522
        %v525 = vadd.f32 %v520, %v524
        %v526 = vstv %s510
        %v527 = vmul.f32 %v525, %v526
        %528 = vmatprep.subr.mxu0 0.0
        %529 = vmatpush1.msra.mxu0 %v527
        %530 = vmatprep.subr.mxu0 0.0
        %531 = vmatpush1.msra.mxu0 0.0
        %532 = vmatprep.subr.mxu0 0.0
        %533 = vmatpush1.msra.mxu0 0.0
        %534 = vmatprep.subr.mxu0 0.0
        %535 = vmatpush1.msra.mxu0 0.0
        %536 = vmatprep.subr.mxu0 0.0
        %537 = vmatpush1.msra.mxu0 0.0
        %538 = vmatprep.subr.mxu0 0.0
        %539 = vmatpush1.msra.mxu0 0.0
        %540 = vmatprep.subr.mxu0 0.0
        %541 = vmatpush1.msra.mxu0 0.0
        %542 = vmatprep.subr.mxu0 0.0
        %543 = vmatpush1.msra.mxu0 0.0
        %544 = vmatprep.subr.mxu0 0.0
        %545 = vmatpush1.msra.mxu0 0.0
        %546 = vmatprep.subr.mxu0 0.0
        %547 = vmatpush1.msra.mxu0 0.0
        %548 = vmatprep.subr.mxu0 0.0
        %549 = vmatpush1.msra.mxu0 0.0
        %550 = vmatprep.subr.mxu0 0.0
        %551 = vmatpush1.msra.mxu0 0.0
        %552 = vmatprep.subr.mxu0 0.0
        %553 = vmatpush1.msra.mxu0 0.0
        %554 = vmatprep.subr.mxu0 0.0
        %555 = vmatpush1.msra.mxu0 0.0
        %556 = vmatprep.subr.mxu0 0.0
        %557 = vmatpush1.msra.mxu0 0.0
        %558 = vmatprep.subr.mxu0 0.0
        %559 = vmatpush1.msra.mxu0 0.0
        %560 = vmatprep.subr.mxu0 0.0
        %561 = vmatpush1.msra.mxu0 0.0
        %562 = vmatprep.subr.mxu0 0.0
        %563 = vmatpush1.msra.mxu0 0.0
        %564 = vmatprep.subr.mxu0 0.0
        %565 = vmatpush1.msra.mxu0 0.0
        %566 = vmatprep.subr.mxu0 0.0
        %567 = vmatpush1.msra.mxu0 0.0
        %568 = vmatprep.subr.mxu0 0.0
        %569 = vmatpush1.msra.mxu0 0.0
        %570 = vmatprep.subr.mxu0 0.0
        %571 = vmatpush1.msra.mxu0 0.0
        %572 = vmatprep.subr.mxu0 0.0
        %573 = vmatpush1.msra.mxu0 0.0
        %574 = vmatprep.subr.mxu0 0.0
        %575 = vmatpush1.msra.mxu0 0.0
        %576 = vmatprep.subr.mxu0 0.0
        %577 = vmatpush1.msra.mxu0 0.0
        %578 = vmatprep.subr.mxu0 0.0
        %579 = vmatpush1.msra.mxu0 0.0
        %580 = vmatprep.subr.mxu0 0.0
        %581 = vmatpush1.msra.mxu0 0.0
        %582 = vmatprep.subr.mxu0 0.0
        %583 = vmatpush1.msra.mxu0 0.0
        %584 = vmatprep.subr.mxu0 0.0
        %585 = vmatpush1.msra.mxu0 0.0
        %586 = vmatprep.subr.mxu0 0.0
        %587 = vmatpush1.msra.mxu0 0.0
        %588 = vmatprep.subr.mxu0 0.0
        %589 = vmatpush1.msra.mxu0 0.0
        %590 = vmatprep.subr.mxu0 0.0
        %591 = vmatpush1.msra.mxu0 0.0
        %592 = vmatprep.mubr.f32.mxu0 0.0
        %593 = vmatmul.mubr.f32.gmra.mrb[0].mxu0 %v345
        %v594 = vpop.f32.mrb[0].mxu0
        %v595 = vadd.f32 %v341, %v594
        %v596 = vpop.f32.mrb[0].mxu0
        %597 = vdwg.mxu0
        %v598 = vstv %s511
        %v599 = vmul.f32 %v598, %v525
        %v600 = vstv %s512
        %v601 = vmul.f32 %v600, %v595
        %v602 = vsub.f32 %v599, %v601
        %v603 = vstv %s513
        %v604 = vmul.f32 %v603, %v602
        %v605 = vadd.f32 %v525, %v604
        %v606 = vstv %s514
        %v607 = vmul.f32 %v605, %v606
        %608 = vmatprep.subr.mxu0 0.0
        %609 = vmatpush1.msra.mxu0 %v607
        %610 = vmatprep.subr.mxu0 0.0
        %611 = vmatpush1.msra.mxu0 0.0
        %612 = vmatprep.subr.mxu0 0.0
        %613 = vmatpush1.msra.mxu0 0.0
        %614 = vmatprep.subr.mxu0 0.0
        %615 = vmatpush1.msra.mxu0 0.0
        %616 = vmatprep.subr.mxu0 0.0
        %617 = vmatpush1.msra.mxu0 0.0
        %618 = vmatprep.subr.mxu0 0.0
        %619 = vmatpush1.msra.mxu0 0.0
        %620 = vmatprep.subr.mxu0 0.0
        %621 = vmatpush1.msra.mxu0 0.0
        %622 = vmatprep.subr.mxu0 0.0
        %623 = vmatpush1.msra.mxu0 0.0
        %624 = vmatprep.subr.mxu0 0.0
        %625 = vmatpush1.msra.mxu0 0.0
        %626 = vmatprep.subr.mxu0 0.0
        %627 = vmatpush1.msra.mxu0 0.0
        %628 = vmatprep.subr.mxu0 0.0
        %629 = vmatpush1.msra.mxu0 0.0
        %630 = vmatprep.subr.mxu0 0.0
        %631 = vmatpush1.msra.mxu0 0.0
        %632 = vmatprep.subr.mxu0 0.0
        %633 = vmatpush1.msra.mxu0 0.0
        %634 = vmatprep.subr.mxu0 0.0
        %635 = vmatpush1.msra.mxu0 0.0
        %636 = vmatprep.subr.mxu0 0.0
        %637 = vmatpush1.msra.mxu0 0.0
        %638 = vmatprep.subr.mxu0 0.0
        %639 = vmatpush1.msra.mxu0 0.0
        %640 = vmatprep.subr.mxu0 0.0
        %641 = vmatpush1.msra.mxu0 0.0
        %642 = vmatprep.subr.mxu0 0.0
        %643 = vmatpush1.msra.mxu0 0.0
        %644 = vmatprep.subr.mxu0 0.0
        %645 = vmatpush1.msra.mxu0 0.0
        %646 = vmatprep.subr.mxu0 0.0
        %647 = vmatpush1.msra.mxu0 0.0
        %648 = vmatprep.subr.mxu0 0.0
        %649 = vmatpush1.msra.mxu0 0.0
        %650 = vmatprep.subr.mxu0 0.0
        %651 = vmatpush1.msra.mxu0 0.0
        %652 = vmatprep.subr.mxu0 0.0
        %653 = vmatpush1.msra.mxu0 0.0
        %654 = vmatprep.subr.mxu0 0.0
        %655 = vmatpush1.msra.mxu0 0.0
        %656 = vmatprep.subr.mxu0 0.0
        %657 = vmatpush1.msra.mxu0 0.0
        %658 = vmatprep.subr.mxu0 0.0
        %659 = vmatpush1.msra.mxu0 0.0
        %660 = vmatprep.subr.mxu0 0.0
        %661 = vmatpush1.msra.mxu0 0.0
        %662 = vmatprep.subr.mxu0 0.0
        %663 = vmatpush1.msra.mxu0 0.0
        %664 = vmatprep.subr.mxu0 0.0
        %665 = vmatpush1.msra.mxu0 0.0
        %666 = vmatprep.subr.mxu0 0.0
        %667 = vmatpush1.msra.mxu0 0.0
        %668 = vmatprep.subr.mxu0 0.0
        %669 = vmatpush1.msra.mxu0 0.0
        %670 = vmatprep.subr.mxu0 0.0
        %671 = vmatpush1.msra.mxu0 0.0
        %672 = vmatprep.mubr.f32.mxu0 0.0
        %673 = vmatmul.mubr.f32.gmra.mrb[0].mxu0 %v345
        %v674 = vpop.f32.mrb[0].mxu0
        %v675 = vadd.f32 %v341, %v674
        %v676 = vpop.f32.mrb[0].mxu0
        %677 = vdwg.mxu0
        %v678 = vstv %s515
        %v679 = vmul.f32 %v678, %v605
        %v680 = vstv %s516
        %v681 = vmul.f32 %v680, %v675
        %v682 = vsub.f32 %v679, %v681
        %v683 = vstv %s517
        %v684 = vmul.f32 %v683, %v602
        %v685 = vadd.f32 %v525, %v684
        %v686 = vstv %s518
        %v687 = vmul.f32 %v686, %v682
        %v688 = vadd.f32 %v685, %v687
        %s689 = sld [smem:[#allocation2 + $0x16]]
        %s690 = sld [smem:[#allocation2 + $0x17]]
        %s691 = sld [smem:[#allocation2 + $0x18]]
        %s692 = sld [smem:[#allocation2 + $0x19]]
        %s693 = sld [smem:[#allocation2 + $0x1a]]
        %s694 = sld [smem:[#allocation2 + $0x1b]]
        %s695 = sld [smem:[#allocation2 + $0x1c]]
        %s696 = sld [smem:[#allocation2 + $0x1d]]
        %s697 = sld [smem:[#allocation2 + $0x1e]]
        %s698 = sld [smem:[#allocation2 + $0x1f]]
        %s699 = sld [smem:[#allocation2 + $0x20]]
        %v700 = vstv %s689
        %v701 = vmul.f32 %v700, %v688
        %s702 = scalar_lea.vmem %s279, 16 [#allocation4]
        %v703 = vld [vmem:[%s702] sm:$0xff]
        %v704 = vstv %s690
        %v705 = vmul.f32 %v704, %v703
        %v706 = vadd.f32 %v701, %v705
        %v707 = vstv %s691
        %v708 = vmul.f32 %v706, %v707
        %709 = vmatprep.subr.mxu0 0.0
        %710 = vmatpush1.msra.mxu0 %v708
        %711 = vmatprep.subr.mxu0 0.0
        %712 = vmatpush1.msra.mxu0 0.0
        %713 = vmatprep.subr.mxu0 0.0
        %714 = vmatpush1.msra.mxu0 0.0
        %715 = vmatprep.subr.mxu0 0.0
        %716 = vmatpush1.msra.mxu0 0.0
        %717 = vmatprep.subr.mxu0 0.0
        %718 = vmatpush1.msra.mxu0 0.0
        %719 = vmatprep.subr.mxu0 0.0
        %720 = vmatpush1.msra.mxu0 0.0
        %721 = vmatprep.subr.mxu0 0.0
        %722 = vmatpush1.msra.mxu0 0.0
        %723 = vmatprep.subr.mxu0 0.0
        %724 = vmatpush1.msra.mxu0 0.0
        %725 = vmatprep.subr.mxu0 0.0
        %726 = vmatpush1.msra.mxu0 0.0
        %727 = vmatprep.subr.mxu0 0.0
        %728 = vmatpush1.msra.mxu0 0.0
        %729 = vmatprep.subr.mxu0 0.0
        %730 = vmatpush1.msra.mxu0 0.0
        %731 = vmatprep.subr.mxu0 0.0
        %732 = vmatpush1.msra.mxu0 0.0
        %733 = vmatprep.subr.mxu0 0.0
        %734 = vmatpush1.msra.mxu0 0.0
        %735 = vmatprep.subr.mxu0 0.0
        %736 = vmatpush1.msra.mxu0 0.0
        %737 = vmatprep.subr.mxu0 0.0
        %738 = vmatpush1.msra.mxu0 0.0
        %739 = vmatprep.subr.mxu0 0.0
        %740 = vmatpush1.msra.mxu0 0.0
        %741 = vmatprep.subr.mxu0 0.0
        %742 = vmatpush1.msra.mxu0 0.0
        %743 = vmatprep.subr.mxu0 0.0
        %744 = vmatpush1.msra.mxu0 0.0
        %745 = vmatprep.subr.mxu0 0.0
        %746 = vmatpush1.msra.mxu0 0.0
        %747 = vmatprep.subr.mxu0 0.0
        %748 = vmatpush1.msra.mxu0 0.0
        %749 = vmatprep.subr.mxu0 0.0
        %750 = vmatpush1.msra.mxu0 0.0
        %751 = vmatprep.subr.mxu0 0.0
        %752 = vmatpush1.msra.mxu0 0.0
        %753 = vmatprep.subr.mxu0 0.0
        %754 = vmatpush1.msra.mxu0 0.0
        %755 = vmatprep.subr.mxu0 0.0
        %756 = vmatpush1.msra.mxu0 0.0
        %757 = vmatprep.subr.mxu0 0.0
        %758 = vmatpush1.msra.mxu0 0.0
        %759 = vmatprep.subr.mxu0 0.0
        %760 = vmatpush1.msra.mxu0 0.0
        %761 = vmatprep.subr.mxu0 0.0
        %762 = vmatpush1.msra.mxu0 0.0
        %763 = vmatprep.subr.mxu0 0.0
        %764 = vmatpush1.msra.mxu0 0.0
        %765 = vmatprep.subr.mxu0 0.0
        %766 = vmatpush1.msra.mxu0 0.0
        %767 = vmatprep.subr.mxu0 0.0
        %768 = vmatpush1.msra.mxu0 0.0
        %769 = vmatprep.subr.mxu0 0.0
        %770 = vmatpush1.msra.mxu0 0.0
        %771 = vmatprep.subr.mxu0 0.0
        %772 = vmatpush1.msra.mxu0 0.0
        %773 = vmatprep.mubr.f32.mxu0 0.0
        %774 = vmatmul.mubr.f32.gmra.mrb[0].mxu0 %v345
        %v775 = vpop.f32.mrb[0].mxu0
        %v776 = vadd.f32 %v341, %v775
        %v777 = vpop.f32.mrb[0].mxu0
        %778 = vdwg.mxu0
        %v779 = vstv %s692
        %v780 = vmul.f32 %v779, %v706
        %v781 = vstv %s693
        %v782 = vmul.f32 %v781, %v776
        %v783 = vsub.f32 %v780, %v782
        %v784 = vstv %s694
        %v785 = vmul.f32 %v784, %v783
        %v786 = vadd.f32 %v706, %v785
        %v787 = vstv %s695
        %v788 = vmul.f32 %v786, %v787
        %789 = vmatprep.subr.mxu0 0.0
        %790 = vmatpush1.msra.mxu0 %v788
        %791 = vmatprep.subr.mxu0 0.0
        %792 = vmatpush1.msra.mxu0 0.0
        %793 = vmatprep.subr.mxu0 0.0
        %794 = vmatpush1.msra.mxu0 0.0
        %795 = vmatprep.subr.mxu0 0.0
        %796 = vmatpush1.msra.mxu0 0.0
        %797 = vmatprep.subr.mxu0 0.0
        %798 = vmatpush1.msra.mxu0 0.0
        %799 = vmatprep.subr.mxu0 0.0
        %800 = vmatpush1.msra.mxu0 0.0
        %801 = vmatprep.subr.mxu0 0.0
        %802 = vmatpush1.msra.mxu0 0.0
        %803 = vmatprep.subr.mxu0 0.0
        %804 = vmatpush1.msra.mxu0 0.0
        %805 = vmatprep.subr.mxu0 0.0
        %806 = vmatpush1.msra.mxu0 0.0
        %807 = vmatprep.subr.mxu0 0.0
        %808 = vmatpush1.msra.mxu0 0.0
        %809 = vmatprep.subr.mxu0 0.0
        %810 = vmatpush1.msra.mxu0 0.0
        %811 = vmatprep.subr.mxu0 0.0
        %812 = vmatpush1.msra.mxu0 0.0
        %813 = vmatprep.subr.mxu0 0.0
        %814 = vmatpush1.msra.mxu0 0.0
        %815 = vmatprep.subr.mxu0 0.0
        %816 = vmatpush1.msra.mxu0 0.0
        %817 = vmatprep.subr.mxu0 0.0
        %818 = vmatpush1.msra.mxu0 0.0
        %819 = vmatprep.subr.mxu0 0.0
        %820 = vmatpush1.msra.mxu0 0.0
        %821 = vmatprep.subr.mxu0 0.0
        %822 = vmatpush1.msra.mxu0 0.0
        %823 = vmatprep.subr.mxu0 0.0
        %824 = vmatpush1.msra.mxu0 0.0
        %825 = vmatprep.subr.mxu0 0.0
        %826 = vmatpush1.msra.mxu0 0.0
        %827 = vmatprep.subr.mxu0 0.0
        %828 = vmatpush1.msra.mxu0 0.0
        %829 = vmatprep.subr.mxu0 0.0
        %830 = vmatpush1.msra.mxu0 0.0
        %831 = vmatprep.subr.mxu0 0.0
        %832 = vmatpush1.msra.mxu0 0.0
        %833 = vmatprep.subr.mxu0 0.0
        %834 = vmatpush1.msra.mxu0 0.0
        %835 = vmatprep.subr.mxu0 0.0
        %836 = vmatpush1.msra.mxu0 0.0
        %837 = vmatprep.subr.mxu0 0.0
        %838 = vmatpush1.msra.mxu0 0.0
        %839 = vmatprep.subr.mxu0 0.0
        %840 = vmatpush1.msra.mxu0 0.0
        %841 = vmatprep.subr.mxu0 0.0
        %842 = vmatpush1.msra.mxu0 0.0
        %843 = vmatprep.subr.mxu0 0.0
        %844 = vmatpush1.msra.mxu0 0.0
        %845 = vmatprep.subr.mxu0 0.0
        %846 = vmatpush1.msra.mxu0 0.0
        %847 = vmatprep.subr.mxu0 0.0
        %848 = vmatpush1.msra.mxu0 0.0
        %849 = vmatprep.subr.mxu0 0.0
        %850 = vmatpush1.msra.mxu0 0.0
        %851 = vmatprep.subr.mxu0 0.0
        %852 = vmatpush1.msra.mxu0 0.0
        %853 = vmatprep.mubr.f32.mxu0 0.0
        %854 = vmatmul.mubr.f32.gmra.mrb[0].mxu0 %v345
        %v855 = vpop.f32.mrb[0].mxu0
        %v856 = vadd.f32 %v341, %v855
        %v857 = vpop.f32.mrb[0].mxu0
        %858 = vdwg.mxu0
        %v859 = vstv %s696
        %v860 = vmul.f32 %v859, %v786
        %v861 = vstv %s697
        %v862 = vmul.f32 %v861, %v856
        %v863 = vsub.f32 %v860, %v862
        %v864 = vstv %s698
        %v865 = vmul.f32 %v864, %v783
        %v866 = vadd.f32 %v706, %v865
        %v867 = vstv %s699
        %v868 = vmul.f32 %v867, %v863
        %v869 = vadd.f32 %v866, %v868
        %s870 = sld [smem:[#allocation2 + $0x21]]
        %s871 = sld [smem:[#allocation2 + $0x22]]
        %s872 = sld [smem:[#allocation2 + $0x23]]
        %s873 = sld [smem:[#allocation2 + $0x24]]
        %s874 = sld [smem:[#allocation2 + $0x25]]
        %s875 = sld [smem:[#allocation2 + $0x26]]
        %s876 = sld [smem:[#allocation2 + $0x27]]
        %s877 = sld [smem:[#allocation2 + $0x28]]
        %s878 = sld [smem:[#allocation2 + $0x29]]
        %s879 = sld [smem:[#allocation2 + $0x2a]]
        %s880 = sld [smem:[#allocation2 + $0x2b]]
        %v881 = vstv %s870
        %v882 = vmul.f32 %v881, %v869
        %s883 = scalar_lea.vmem %s279, 24 [#allocation4]
        %v884 = vld [vmem:[%s883] sm:$0xff]
        %v885 = vstv %s871
        %v886 = vmul.f32 %v885, %v884
        %v887 = vadd.f32 %v882, %v886
        %v888 = vstv %s872
        %v889 = vmul.f32 %v887, %v888
        %890 = vmatprep.subr.mxu0 0.0
        %891 = vmatpush1.msra.mxu0 %v889
        %892 = vmatprep.subr.mxu0 0.0
        %893 = vmatpush1.msra.mxu0 0.0
        %894 = vmatprep.subr.mxu0 0.0
        %895 = vmatpush1.msra.mxu0 0.0
        %896 = vmatprep.subr.mxu0 0.0
        %897 = vmatpush1.msra.mxu0 0.0
        %898 = vmatprep.subr.mxu0 0.0
        %899 = vmatpush1.msra.mxu0 0.0
        %900 = vmatprep.subr.mxu0 0.0
        %901 = vmatpush1.msra.mxu0 0.0
        %902 = vmatprep.subr.mxu0 0.0
        %903 = vmatpush1.msra.mxu0 0.0
        %904 = vmatprep.subr.mxu0 0.0
        %905 = vmatpush1.msra.mxu0 0.0
        %906 = vmatprep.subr.mxu0 0.0
        %907 = vmatpush1.msra.mxu0 0.0
        %908 = vmatprep.subr.mxu0 0.0
        %909 = vmatpush1.msra.mxu0 0.0
        %910 = vmatprep.subr.mxu0 0.0
        %911 = vmatpush1.msra.mxu0 0.0
        %912 = vmatprep.subr.mxu0 0.0
        %913 = vmatpush1.msra.mxu0 0.0
        %914 = vmatprep.subr.mxu0 0.0
        %915 = vmatpush1.msra.mxu0 0.0
        %916 = vmatprep.subr.mxu0 0.0
        %917 = vmatpush1.msra.mxu0 0.0
        %918 = vmatprep.subr.mxu0 0.0
        %919 = vmatpush1.msra.mxu0 0.0
        %920 = vmatprep.subr.mxu0 0.0
        %921 = vmatpush1.msra.mxu0 0.0
        %922 = vmatprep.subr.mxu0 0.0
        %923 = vmatpush1.msra.mxu0 0.0
        %924 = vmatprep.subr.mxu0 0.0
        %925 = vmatpush1.msra.mxu0 0.0
        %926 = vmatprep.subr.mxu0 0.0
        %927 = vmatpush1.msra.mxu0 0.0
        %928 = vmatprep.subr.mxu0 0.0
        %929 = vmatpush1.msra.mxu0 0.0
        %930 = vmatprep.subr.mxu0 0.0
        %931 = vmatpush1.msra.mxu0 0.0
        %932 = vmatprep.subr.mxu0 0.0
        %933 = vmatpush1.msra.mxu0 0.0
        %934 = vmatprep.subr.mxu0 0.0
        %935 = vmatpush1.msra.mxu0 0.0
        %936 = vmatprep.subr.mxu0 0.0
        %937 = vmatpush1.msra.mxu0 0.0
        %938 = vmatprep.subr.mxu0 0.0
        %939 = vmatpush1.msra.mxu0 0.0
        %940 = vmatprep.subr.mxu0 0.0
        %941 = vmatpush1.msra.mxu0 0.0
        %942 = vmatprep.subr.mxu0 0.0
        %943 = vmatpush1.msra.mxu0 0.0
        %944 = vmatprep.subr.mxu0 0.0
        %945 = vmatpush1.msra.mxu0 0.0
        %946 = vmatprep.subr.mxu0 0.0
        %947 = vmatpush1.msra.mxu0 0.0
        %948 = vmatprep.subr.mxu0 0.0
        %949 = vmatpush1.msra.mxu0 0.0
        %950 = vmatprep.subr.mxu0 0.0
        %951 = vmatpush1.msra.mxu0 0.0
        %952 = vmatprep.subr.mxu0 0.0
        %953 = vmatpush1.msra.mxu0 0.0
        %954 = vmatprep.mubr.f32.mxu0 0.0
        %955 = vmatmul.mubr.f32.gmra.mrb[0].mxu0 %v345
        %v956 = vpop.f32.mrb[0].mxu0
        %v957 = vadd.f32 %v341, %v956
        %v958 = vpop.f32.mrb[0].mxu0
        %959 = vdwg.mxu0
        %v960 = vstv %s873
        %v961 = vmul.f32 %v960, %v887
        %v962 = vstv %s874
        %v963 = vmul.f32 %v962, %v957
        %v964 = vsub.f32 %v961, %v963
        %v965 = vstv %s875
        %v966 = vmul.f32 %v965, %v964
        %v967 = vadd.f32 %v887, %v966
        %v968 = vstv %s876
        %v969 = vmul.f32 %v967, %v968
        %970 = vmatprep.subr.mxu0 0.0
        %971 = vmatpush1.msra.mxu0 %v969
        %972 = vmatprep.subr.mxu0 0.0
        %973 = vmatpush1.msra.mxu0 0.0
        %974 = vmatprep.subr.mxu0 0.0
        %975 = vmatpush1.msra.mxu0 0.0
        %976 = vmatprep.subr.mxu0 0.0
        %977 = vmatpush1.msra.mxu0 0.0
        %978 = vmatprep.subr.mxu0 0.0
        %979 = vmatpush1.msra.mxu0 0.0
        %980 = vmatprep.subr.mxu0 0.0
        %981 = vmatpush1.msra.mxu0 0.0
        %982 = vmatprep.subr.mxu0 0.0
        %983 = vmatpush1.msra.mxu0 0.0
        %984 = vmatprep.subr.mxu0 0.0
        %985 = vmatpush1.msra.mxu0 0.0
        %986 = vmatprep.subr.mxu0 0.0
        %987 = vmatpush1.msra.mxu0 0.0
        %988 = vmatprep.subr.mxu0 0.0
        %989 = vmatpush1.msra.mxu0 0.0
        %990 = vmatprep.subr.mxu0 0.0
        %991 = vmatpush1.msra.mxu0 0.0
        %992 = vmatprep.subr.mxu0 0.0
        %993 = vmatpush1.msra.mxu0 0.0
        %994 = vmatprep.subr.mxu0 0.0
        %995 = vmatpush1.msra.mxu0 0.0
        %996 = vmatprep.subr.mxu0 0.0
        %997 = vmatpush1.msra.mxu0 0.0
        %998 = vmatprep.subr.mxu0 0.0
        %999 = vmatpush1.msra.mxu0 0.0
        %1000 = vmatprep.subr.mxu0 0.0
        %1001 = vmatpush1.msra.mxu0 0.0
        %1002 = vmatprep.subr.mxu0 0.0
        %1003 = vmatpush1.msra.mxu0 0.0
        %1004 = vmatprep.subr.mxu0 0.0
        %1005 = vmatpush1.msra.mxu0 0.0
        %1006 = vmatprep.subr.mxu0 0.0
        %1007 = vmatpush1.msra.mxu0 0.0
        %1008 = vmatprep.subr.mxu0 0.0
        %1009 = vmatpush1.msra.mxu0 0.0
        %1010 = vmatprep.subr.mxu0 0.0
        %1011 = vmatpush1.msra.mxu0 0.0
        %1012 = vmatprep.subr.mxu0 0.0
        %1013 = vmatpush1.msra.mxu0 0.0
        %1014 = vmatprep.subr.mxu0 0.0
        %1015 = vmatpush1.msra.mxu0 0.0
        %1016 = vmatprep.subr.mxu0 0.0
        %1017 = vmatpush1.msra.mxu0 0.0
        %1018 = vmatprep.subr.mxu0 0.0
        %1019 = vmatpush1.msra.mxu0 0.0
        %1020 = vmatprep.subr.mxu0 0.0
        %1021 = vmatpush1.msra.mxu0 0.0
        %1022 = vmatprep.subr.mxu0 0.0
        %1023 = vmatpush1.msra.mxu0 0.0
        %1024 = vmatprep.subr.mxu0 0.0
        %1025 = vmatpush1.msra.mxu0 0.0
        %1026 = vmatprep.subr.mxu0 0.0
        %1027 = vmatpush1.msra.mxu0 0.0
        %1028 = vmatprep.subr.mxu0 0.0
        %1029 = vmatpush1.msra.mxu0 0.0
        %1030 = vmatprep.subr.mxu0 0.0
        %1031 = vmatpush1.msra.mxu0 0.0
        %1032 = vmatprep.subr.mxu0 0.0
        %1033 = vmatpush1.msra.mxu0 0.0
        %1034 = vmatprep.mubr.f32.mxu0 0.0
        %1035 = vmatmul.mubr.f32.gmra.mrb[0].mxu0 %v345
        %v1036 = vpop.f32.mrb[0].mxu0
        %v1037 = vadd.f32 %v341, %v1036
        %v1038 = vpop.f32.mrb[0].mxu0
        %1039 = vdwg.mxu0
        %v1040 = vstv %s877
        %v1041 = vmul.f32 %v1040, %v967
        %v1042 = vstv %s878
        %v1043 = vmul.f32 %v1042, %v1037
        %v1044 = vsub.f32 %v1041, %v1043
        %v1045 = vstv %s879
        %v1046 = vmul.f32 %v1045, %v964
        %v1047 = vadd.f32 %v887, %v1046
        %v1048 = vstv %s880
        %v1049 = vmul.f32 %v1048, %v1044
        %v1050 = vadd.f32 %v1047, %v1049
        %s1051 = sld [smem:[#allocation2 + $0x2c]]
        %s1052 = sld [smem:[#allocation2 + $0x2d]]
        %s1053 = sld [smem:[#allocation2 + $0x2e]]
        %s1054 = sld [smem:[#allocation2 + $0x2f]]
        %s1055 = sld [smem:[#allocation2 + $0x30]]
        %s1056 = sld [smem:[#allocation2 + $0x31]]
        %s1057 = sld [smem:[#allocation2 + $0x32]]
        %s1058 = sld [smem:[#allocation2 + $0x33]]
        %s1059 = sld [smem:[#allocation2 + $0x34]]
        %s1060 = sld [smem:[#allocation2 + $0x35]]
        %s1061 = sld [smem:[#allocation2 + $0x36]]
        %v1062 = vstv %s1051
        %v1063 = vmul.f32 %v1062, %v1050
        %s1064 = scalar_lea.vmem %s279, 32 [#allocation4]
        %v1065 = vld [vmem:[%s1064] sm:$0xff]
        %v1066 = vstv %s1052
        %v1067 = vmul.f32 %v1066, %v1065
        %v1068 = vadd.f32 %v1063, %v1067
        %v1069 = vstv %s1053
        %v1070 = vmul.f32 %v1068, %v1069
        %1071 = vmatprep.subr.mxu0 0.0
        %1072 = vmatpush1.msra.mxu0 %v1070
        %1073 = vmatprep.subr.mxu0 0.0
        %1074 = vmatpush1.msra.mxu0 0.0
        %1075 = vmatprep.subr.mxu0 0.0
        %1076 = vmatpush1.msra.mxu0 0.0
        %1077 = vmatprep.subr.mxu0 0.0
        %1078 = vmatpush1.msra.mxu0 0.0
        %1079 = vmatprep.subr.mxu0 0.0
        %1080 = vmatpush1.msra.mxu0 0.0
        %1081 = vmatprep.subr.mxu0 0.0
        %1082 = vmatpush1.msra.mxu0 0.0
        %1083 = vmatprep.subr.mxu0 0.0
        %1084 = vmatpush1.msra.mxu0 0.0
        %1085 = vmatprep.subr.mxu0 0.0
        %1086 = vmatpush1.msra.mxu0 0.0
        %1087 = vmatprep.subr.mxu0 0.0
        %1088 = vmatpush1.msra.mxu0 0.0
        %1089 = vmatprep.subr.mxu0 0.0
        %1090 = vmatpush1.msra.mxu0 0.0
        %1091 = vmatprep.subr.mxu0 0.0
        %1092 = vmatpush1.msra.mxu0 0.0
        %1093 = vmatprep.subr.mxu0 0.0
        %1094 = vmatpush1.msra.mxu0 0.0
        %1095 = vmatprep.subr.mxu0 0.0
        %1096 = vmatpush1.msra.mxu0 0.0
        %1097 = vmatprep.subr.mxu0 0.0
        %1098 = vmatpush1.msra.mxu0 0.0
        %1099 = vmatprep.subr.mxu0 0.0
        %1100 = vmatpush1.msra.mxu0 0.0
        %1101 = vmatprep.subr.mxu0 0.0
        %1102 = vmatpush1.msra.mxu0 0.0
        %1103 = vmatprep.subr.mxu0 0.0
        %1104 = vmatpush1.msra.mxu0 0.0
        %1105 = vmatprep.subr.mxu0 0.0
        %1106 = vmatpush1.msra.mxu0 0.0
        %1107 = vmatprep.subr.mxu0 0.0
        %1108 = vmatpush1.msra.mxu0 0.0
        %1109 = vmatprep.subr.mxu0 0.0
        %1110 = vmatpush1.msra.mxu0 0.0
        %1111 = vmatprep.subr.mxu0 0.0
        %1112 = vmatpush1.msra.mxu0 0.0
        %1113 = vmatprep.subr.mxu0 0.0
        %1114 = vmatpush1.msra.mxu0 0.0
        %1115 = vmatprep.subr.mxu0 0.0
        %1116 = vmatpush1.msra.mxu0 0.0
        %1117 = vmatprep.subr.mxu0 0.0
        %1118 = vmatpush1.msra.mxu0 0.0
        %1119 = vmatprep.subr.mxu0 0.0
        %1120 = vmatpush1.msra.mxu0 0.0
        %1121 = vmatprep.subr.mxu0 0.0
        %1122 = vmatpush1.msra.mxu0 0.0
        %1123 = vmatprep.subr.mxu0 0.0
        %1124 = vmatpush1.msra.mxu0 0.0
        %1125 = vmatprep.subr.mxu0 0.0
        %1126 = vmatpush1.msra.mxu0 0.0
        %1127 = vmatprep.subr.mxu0 0.0
        %1128 = vmatpush1.msra.mxu0 0.0
        %1129 = vmatprep.subr.mxu0 0.0
        %1130 = vmatpush1.msra.mxu0 0.0
        %1131 = vmatprep.subr.mxu0 0.0
        %1132 = vmatpush1.msra.mxu0 0.0
        %1133 = vmatprep.subr.mxu0 0.0
        %1134 = vmatpush1.msra.mxu0 0.0
        %1135 = vmatprep.mubr.f32.mxu0 0.0
        %1136 = vmatmul.mubr.f32.gmra.mrb[0].mxu0 %v345
        %v1137 = vpop.f32.mrb[0].mxu0
        %v1138 = vadd.f32 %v341, %v1137
        %v1139 = vpop.f32.mrb[0].mxu0
        %1140 = vdwg.mxu0
        %v1141 = vstv %s1054
        %v1142 = vmul.f32 %v1141, %v1068
        %v1143 = vstv %s1055
        %v1144 = vmul.f32 %v1143, %v1138
        %v1145 = vsub.f32 %v1142, %v1144
        %v1146 = vstv %s1056
        %v1147 = vmul.f32 %v1146, %v1145
        %v1148 = vadd.f32 %v1068, %v1147
        %v1149 = vstv %s1057
        %v1150 = vmul.f32 %v1148, %v1149
        %1151 = vmatprep.subr.mxu0 0.0
        %1152 = vmatpush1.msra.mxu0 %v1150
        %1153 = vmatprep.subr.mxu0 0.0
        %1154 = vmatpush1.msra.mxu0 0.0
        %1155 = vmatprep.subr.mxu0 0.0
        %1156 = vmatpush1.msra.mxu0 0.0
        %1157 = vmatprep.subr.mxu0 0.0
        %1158 = vmatpush1.msra.mxu0 0.0
        %1159 = vmatprep.subr.mxu0 0.0
        %1160 = vmatpush1.msra.mxu0 0.0
        %1161 = vmatprep.subr.mxu0 0.0
        %1162 = vmatpush1.msra.mxu0 0.0
        %1163 = vmatprep.subr.mxu0 0.0
        %1164 = vmatpush1.msra.mxu0 0.0
        %1165 = vmatprep.subr.mxu0 0.0
        %1166 = vmatpush1.msra.mxu0 0.0
        %1167 = vmatprep.subr.mxu0 0.0
        %1168 = vmatpush1.msra.mxu0 0.0
        %1169 = vmatprep.subr.mxu0 0.0
        %1170 = vmatpush1.msra.mxu0 0.0
        %1171 = vmatprep.subr.mxu0 0.0
        %1172 = vmatpush1.msra.mxu0 0.0
        %1173 = vmatprep.subr.mxu0 0.0
        %1174 = vmatpush1.msra.mxu0 0.0
        %1175 = vmatprep.subr.mxu0 0.0
        %1176 = vmatpush1.msra.mxu0 0.0
        %1177 = vmatprep.subr.mxu0 0.0
        %1178 = vmatpush1.msra.mxu0 0.0
        %1179 = vmatprep.subr.mxu0 0.0
        %1180 = vmatpush1.msra.mxu0 0.0
        %1181 = vmatprep.subr.mxu0 0.0
        %1182 = vmatpush1.msra.mxu0 0.0
        %1183 = vmatprep.subr.mxu0 0.0
        %1184 = vmatpush1.msra.mxu0 0.0
        %1185 = vmatprep.subr.mxu0 0.0
        %1186 = vmatpush1.msra.mxu0 0.0
        %1187 = vmatprep.subr.mxu0 0.0
        %1188 = vmatpush1.msra.mxu0 0.0
        %1189 = vmatprep.subr.mxu0 0.0
        %1190 = vmatpush1.msra.mxu0 0.0
        %1191 = vmatprep.subr.mxu0 0.0
        %1192 = vmatpush1.msra.mxu0 0.0
        %1193 = vmatprep.subr.mxu0 0.0
        %1194 = vmatpush1.msra.mxu0 0.0
        %1195 = vmatprep.subr.mxu0 0.0
        %1196 = vmatpush1.msra.mxu0 0.0
        %1197 = vmatprep.subr.mxu0 0.0
        %1198 = vmatpush1.msra.mxu0 0.0
        %1199 = vmatprep.subr.mxu0 0.0
        %1200 = vmatpush1.msra.mxu0 0.0
        %1201 = vmatprep.subr.mxu0 0.0
        %1202 = vmatpush1.msra.mxu0 0.0
        %1203 = vmatprep.subr.mxu0 0.0
        %1204 = vmatpush1.msra.mxu0 0.0
        %1205 = vmatprep.subr.mxu0 0.0
        %1206 = vmatpush1.msra.mxu0 0.0
        %1207 = vmatprep.subr.mxu0 0.0
        %1208 = vmatpush1.msra.mxu0 0.0
        %1209 = vmatprep.subr.mxu0 0.0
        %1210 = vmatpush1.msra.mxu0 0.0
        %1211 = vmatprep.subr.mxu0 0.0
        %1212 = vmatpush1.msra.mxu0 0.0
        %1213 = vmatprep.subr.mxu0 0.0
        %1214 = vmatpush1.msra.mxu0 0.0
        %1215 = vmatprep.mubr.f32.mxu0 0.0
        %1216 = vmatmul.mubr.f32.gmra.mrb[0].mxu0 %v345
        %v1217 = vpop.f32.mrb[0].mxu0
        %v1218 = vadd.f32 %v341, %v1217
        %v1219 = vpop.f32.mrb[0].mxu0
        %1220 = vdwg.mxu0
        %v1221 = vstv %s1058
        %v1222 = vmul.f32 %v1221, %v1148
        %v1223 = vstv %s1059
        %v1224 = vmul.f32 %v1223, %v1218
        %v1225 = vsub.f32 %v1222, %v1224
        %v1226 = vstv %s1060
        %v1227 = vmul.f32 %v1226, %v1145
        %v1228 = vadd.f32 %v1068, %v1227
        %v1229 = vstv %s1061
        %v1230 = vmul.f32 %v1229, %v1225
        %v1231 = vadd.f32 %v1228, %v1230
        %s1232 = sld [smem:[#allocation2 + $0x37]]
        %s1233 = sld [smem:[#allocation2 + $0x38]]
        %s1234 = sld [smem:[#allocation2 + $0x39]]
        %s1235 = sld [smem:[#allocation2 + $0x3a]]
        %s1236 = sld [smem:[#allocation2 + $0x3b]]
        %s1237 = sld [smem:[#allocation2 + $0x3c]]
        %s1238 = sld [smem:[#allocation2 + $0x3d]]
        %s1239 = sld [smem:[#allocation2 + $0x3e]]
        %s1240 = sld [smem:[#allocation2 + $0x3f]]
        %s1241 = sld [smem:[#allocation2 + $0x40]]
        %s1242 = sld [smem:[#allocation2 + $0x41]]
        %v1243 = vstv %s1232
        %v1244 = vmul.f32 %v1243, %v1231
        %s1245 = scalar_lea.vmem %s279, 40 [#allocation4]
        %v1246 = vld [vmem:[%s1245] sm:$0xff]
        %v1247 = vstv %s1233
        %v1248 = vmul.f32 %v1247, %v1246
        %v1249 = vadd.f32 %v1244, %v1248
        %v1250 = vstv %s1234
        %v1251 = vmul.f32 %v1249, %v1250
        %1252 = vmatprep.subr.mxu0 0.0
        %1253 = vmatpush1.msra.mxu0 %v1251
        %1254 = vmatprep.subr.mxu0 0.0
        %1255 = vmatpush1.msra.mxu0 0.0
        %1256 = vmatprep.subr.mxu0 0.0
        %1257 = vmatpush1.msra.mxu0 0.0
        %1258 = vmatprep.subr.mxu0 0.0
        %1259 = vmatpush1.msra.mxu0 0.0
        %1260 = vmatprep.subr.mxu0 0.0
        %1261 = vmatpush1.msra.mxu0 0.0
        %1262 = vmatprep.subr.mxu0 0.0
        %1263 = vmatpush1.msra.mxu0 0.0
        %1264 = vmatprep.subr.mxu0 0.0
        %1265 = vmatpush1.msra.mxu0 0.0
        %1266 = vmatprep.subr.mxu0 0.0
        %1267 = vmatpush1.msra.mxu0 0.0
        %1268 = vmatprep.subr.mxu0 0.0
        %1269 = vmatpush1.msra.mxu0 0.0
        %1270 = vmatprep.subr.mxu0 0.0
        %1271 = vmatpush1.msra.mxu0 0.0
        %1272 = vmatprep.subr.mxu0 0.0
        %1273 = vmatpush1.msra.mxu0 0.0
        %1274 = vmatprep.subr.mxu0 0.0
        %1275 = vmatpush1.msra.mxu0 0.0
        %1276 = vmatprep.subr.mxu0 0.0
        %1277 = vmatpush1.msra.mxu0 0.0
        %1278 = vmatprep.subr.mxu0 0.0
        %1279 = vmatpush1.msra.mxu0 0.0
        %1280 = vmatprep.subr.mxu0 0.0
        %1281 = vmatpush1.msra.mxu0 0.0
        %1282 = vmatprep.subr.mxu0 0.0
        %1283 = vmatpush1.msra.mxu0 0.0
        %1284 = vmatprep.subr.mxu0 0.0
        %1285 = vmatpush1.msra.mxu0 0.0
        %1286 = vmatprep.subr.mxu0 0.0
        %1287 = vmatpush1.msra.mxu0 0.0
        %1288 = vmatprep.subr.mxu0 0.0
        %1289 = vmatpush1.msra.mxu0 0.0
        %1290 = vmatprep.subr.mxu0 0.0
        %1291 = vmatpush1.msra.mxu0 0.0
        %1292 = vmatprep.subr.mxu0 0.0
        %1293 = vmatpush1.msra.mxu0 0.0
        %1294 = vmatprep.subr.mxu0 0.0
        %1295 = vmatpush1.msra.mxu0 0.0
        %1296 = vmatprep.subr.mxu0 0.0
        %1297 = vmatpush1.msra.mxu0 0.0
        %1298 = vmatprep.subr.mxu0 0.0
        %1299 = vmatpush1.msra.mxu0 0.0
        %1300 = vmatprep.subr.mxu0 0.0
        %1301 = vmatpush1.msra.mxu0 0.0
        %1302 = vmatprep.subr.mxu0 0.0
        %1303 = vmatpush1.msra.mxu0 0.0
        %1304 = vmatprep.subr.mxu0 0.0
        %1305 = vmatpush1.msra.mxu0 0.0
        %1306 = vmatprep.subr.mxu0 0.0
        %1307 = vmatpush1.msra.mxu0 0.0
        %1308 = vmatprep.subr.mxu0 0.0
        %1309 = vmatpush1.msra.mxu0 0.0
        %1310 = vmatprep.subr.mxu0 0.0
        %1311 = vmatpush1.msra.mxu0 0.0
        %1312 = vmatprep.subr.mxu0 0.0
        %1313 = vmatpush1.msra.mxu0 0.0
        %1314 = vmatprep.subr.mxu0 0.0
        %1315 = vmatpush1.msra.mxu0 0.0
        %1316 = vmatprep.mubr.f32.mxu0 0.0
        %1317 = vmatmul.mubr.f32.gmra.mrb[0].mxu0 %v345
        %v1318 = vpop.f32.mrb[0].mxu0
        %v1319 = vadd.f32 %v341, %v1318
        %v1320 = vpop.f32.mrb[0].mxu0
        %1321 = vdwg.mxu0
        %v1322 = vstv %s1235
        %v1323 = vmul.f32 %v1322, %v1249
        %v1324 = vstv %s1236
        %v1325 = vmul.f32 %v1324, %v1319
        %v1326 = vsub.f32 %v1323, %v1325
        %v1327 = vstv %s1237
        %v1328 = vmul.f32 %v1327, %v1326
        %v1329 = vadd.f32 %v1249, %v1328
        %v1330 = vstv %s1238
        %v1331 = vmul.f32 %v1329, %v1330
        %1332 = vmatprep.subr.mxu0 0.0
        %1333 = vmatpush1.msra.mxu0 %v1331
        %1334 = vmatprep.subr.mxu0 0.0
        %1335 = vmatpush1.msra.mxu0 0.0
        %1336 = vmatprep.subr.mxu0 0.0
        %1337 = vmatpush1.msra.mxu0 0.0
        %1338 = vmatprep.subr.mxu0 0.0
        %1339 = vmatpush1.msra.mxu0 0.0
        %1340 = vmatprep.subr.mxu0 0.0
        %1341 = vmatpush1.msra.mxu0 0.0
        %1342 = vmatprep.subr.mxu0 0.0
        %1343 = vmatpush1.msra.mxu0 0.0
        %1344 = vmatprep.subr.mxu0 0.0
        %1345 = vmatpush1.msra.mxu0 0.0
        %1346 = vmatprep.subr.mxu0 0.0
        %1347 = vmatpush1.msra.mxu0 0.0
        %1348 = vmatprep.subr.mxu0 0.0
        %1349 = vmatpush1.msra.mxu0 0.0
        %1350 = vmatprep.subr.mxu0 0.0
        %1351 = vmatpush1.msra.mxu0 0.0
        %1352 = vmatprep.subr.mxu0 0.0
        %1353 = vmatpush1.msra.mxu0 0.0
        %1354 = vmatprep.subr.mxu0 0.0
        %1355 = vmatpush1.msra.mxu0 0.0
        %1356 = vmatprep.subr.mxu0 0.0
        %1357 = vmatpush1.msra.mxu0 0.0
        %1358 = vmatprep.subr.mxu0 0.0
        %1359 = vmatpush1.msra.mxu0 0.0
        %1360 = vmatprep.subr.mxu0 0.0
        %1361 = vmatpush1.msra.mxu0 0.0
        %1362 = vmatprep.subr.mxu0 0.0
        %1363 = vmatpush1.msra.mxu0 0.0
        %1364 = vmatprep.subr.mxu0 0.0
        %1365 = vmatpush1.msra.mxu0 0.0
        %1366 = vmatprep.subr.mxu0 0.0
        %1367 = vmatpush1.msra.mxu0 0.0
        %1368 = vmatprep.subr.mxu0 0.0
        %1369 = vmatpush1.msra.mxu0 0.0
        %1370 = vmatprep.subr.mxu0 0.0
        %1371 = vmatpush1.msra.mxu0 0.0
        %1372 = vmatprep.subr.mxu0 0.0
        %1373 = vmatpush1.msra.mxu0 0.0
        %1374 = vmatprep.subr.mxu0 0.0
        %1375 = vmatpush1.msra.mxu0 0.0
        %1376 = vmatprep.subr.mxu0 0.0
        %1377 = vmatpush1.msra.mxu0 0.0
        %1378 = vmatprep.subr.mxu0 0.0
        %1379 = vmatpush1.msra.mxu0 0.0
        %1380 = vmatprep.subr.mxu0 0.0
        %1381 = vmatpush1.msra.mxu0 0.0
        %1382 = vmatprep.subr.mxu0 0.0
        %1383 = vmatpush1.msra.mxu0 0.0
        %1384 = vmatprep.subr.mxu0 0.0
        %1385 = vmatpush1.msra.mxu0 0.0
        %1386 = vmatprep.subr.mxu0 0.0
        %1387 = vmatpush1.msra.mxu0 0.0
        %1388 = vmatprep.subr.mxu0 0.0
        %1389 = vmatpush1.msra.mxu0 0.0
        %1390 = vmatprep.subr.mxu0 0.0
        %1391 = vmatpush1.msra.mxu0 0.0
        %1392 = vmatprep.subr.mxu0 0.0
        %1393 = vmatpush1.msra.mxu0 0.0
        %1394 = vmatprep.subr.mxu0 0.0
        %1395 = vmatpush1.msra.mxu0 0.0
        %1396 = vmatprep.mubr.f32.mxu0 0.0
        %1397 = vmatmul.mubr.f32.gmra.mrb[0].mxu0 %v345
        %v1398 = vpop.f32.mrb[0].mxu0
        %v1399 = vadd.f32 %v341, %v1398
        %v1400 = vpop.f32.mrb[0].mxu0
        %1401 = vdwg.mxu0
        %v1402 = vstv %s1239
        %v1403 = vmul.f32 %v1402, %v1329
        %v1404 = vstv %s1240
        %v1405 = vmul.f32 %v1404, %v1399
        %v1406 = vsub.f32 %v1403, %v1405
        %v1407 = vstv %s1241
        %v1408 = vmul.f32 %v1407, %v1326
        %v1409 = vadd.f32 %v1249, %v1408
        %v1410 = vstv %s1242
        %v1411 = vmul.f32 %v1410, %v1406
        %v1412 = vadd.f32 %v1409, %v1411
        %s1413 = sld [smem:[#allocation2 + $0x42]]
        %s1414 = sld [smem:[#allocation2 + $0x43]]
        %s1415 = sld [smem:[#allocation2 + $0x44]]
        %s1416 = sld [smem:[#allocation2 + $0x45]]
        %s1417 = sld [smem:[#allocation2 + $0x46]]
        %s1418 = sld [smem:[#allocation2 + $0x47]]
        %s1419 = sld [smem:[#allocation2 + $0x48]]
        %s1420 = sld [smem:[#allocation2 + $0x49]]
        %s1421 = sld [smem:[#allocation2 + $0x4a]]
        %s1422 = sld [smem:[#allocation2 + $0x4b]]
        %s1423 = sld [smem:[#allocation2 + $0x4c]]
        %v1424 = vstv %s1413
        %v1425 = vmul.f32 %v1424, %v1412
        %s1426 = scalar_lea.vmem %s279, 48 [#allocation4]
        %v1427 = vld [vmem:[%s1426] sm:$0xff]
        %v1428 = vstv %s1414
        %v1429 = vmul.f32 %v1428, %v1427
        %v1430 = vadd.f32 %v1425, %v1429
        %v1431 = vstv %s1415
        %v1432 = vmul.f32 %v1430, %v1431
        %1433 = vmatprep.subr.mxu0 0.0
        %1434 = vmatpush1.msra.mxu0 %v1432
        %1435 = vmatprep.subr.mxu0 0.0
        %1436 = vmatpush1.msra.mxu0 0.0
        %1437 = vmatprep.subr.mxu0 0.0
        %1438 = vmatpush1.msra.mxu0 0.0
        %1439 = vmatprep.subr.mxu0 0.0
        %1440 = vmatpush1.msra.mxu0 0.0
        %1441 = vmatprep.subr.mxu0 0.0
        %1442 = vmatpush1.msra.mxu0 0.0
        %1443 = vmatprep.subr.mxu0 0.0
        %1444 = vmatpush1.msra.mxu0 0.0
        %1445 = vmatprep.subr.mxu0 0.0
        %1446 = vmatpush1.msra.mxu0 0.0
        %1447 = vmatprep.subr.mxu0 0.0
        %1448 = vmatpush1.msra.mxu0 0.0
        %1449 = vmatprep.subr.mxu0 0.0
        %1450 = vmatpush1.msra.mxu0 0.0
        %1451 = vmatprep.subr.mxu0 0.0
        %1452 = vmatpush1.msra.mxu0 0.0
        %1453 = vmatprep.subr.mxu0 0.0
        %1454 = vmatpush1.msra.mxu0 0.0
        %1455 = vmatprep.subr.mxu0 0.0
        %1456 = vmatpush1.msra.mxu0 0.0
        %1457 = vmatprep.subr.mxu0 0.0
        %1458 = vmatpush1.msra.mxu0 0.0
        %1459 = vmatprep.subr.mxu0 0.0
        %1460 = vmatpush1.msra.mxu0 0.0
        %1461 = vmatprep.subr.mxu0 0.0
        %1462 = vmatpush1.msra.mxu0 0.0
        %1463 = vmatprep.subr.mxu0 0.0
        %1464 = vmatpush1.msra.mxu0 0.0
        %1465 = vmatprep.subr.mxu0 0.0
        %1466 = vmatpush1.msra.mxu0 0.0
        %1467 = vmatprep.subr.mxu0 0.0
        %1468 = vmatpush1.msra.mxu0 0.0
        %1469 = vmatprep.subr.mxu0 0.0
        %1470 = vmatpush1.msra.mxu0 0.0
        %1471 = vmatprep.subr.mxu0 0.0
        %1472 = vmatpush1.msra.mxu0 0.0
        %1473 = vmatprep.subr.mxu0 0.0
        %1474 = vmatpush1.msra.mxu0 0.0
        %1475 = vmatprep.subr.mxu0 0.0
        %1476 = vmatpush1.msra.mxu0 0.0
        %1477 = vmatprep.subr.mxu0 0.0
        %1478 = vmatpush1.msra.mxu0 0.0
        %1479 = vmatprep.subr.mxu0 0.0
        %1480 = vmatpush1.msra.mxu0 0.0
        %1481 = vmatprep.subr.mxu0 0.0
        %1482 = vmatpush1.msra.mxu0 0.0
        %1483 = vmatprep.subr.mxu0 0.0
        %1484 = vmatpush1.msra.mxu0 0.0
        %1485 = vmatprep.subr.mxu0 0.0
        %1486 = vmatpush1.msra.mxu0 0.0
        %1487 = vmatprep.subr.mxu0 0.0
        %1488 = vmatpush1.msra.mxu0 0.0
        %1489 = vmatprep.subr.mxu0 0.0
        %1490 = vmatpush1.msra.mxu0 0.0
        %1491 = vmatprep.subr.mxu0 0.0
        %1492 = vmatpush1.msra.mxu0 0.0
        %1493 = vmatprep.subr.mxu0 0.0
        %1494 = vmatpush1.msra.mxu0 0.0
        %1495 = vmatprep.subr.mxu0 0.0
        %1496 = vmatpush1.msra.mxu0 0.0
        %1497 = vmatprep.mubr.f32.mxu0 0.0
        %1498 = vmatmul.mubr.f32.gmra.mrb[0].mxu0 %v345
        %v1499 = vpop.f32.mrb[0].mxu0
        %v1500 = vadd.f32 %v341, %v1499
        %v1501 = vpop.f32.mrb[0].mxu0
        %1502 = vdwg.mxu0
        %v1503 = vstv %s1416
        %v1504 = vmul.f32 %v1503, %v1430
        %v1505 = vstv %s1417
        %v1506 = vmul.f32 %v1505, %v1500
        %v1507 = vsub.f32 %v1504, %v1506
        %v1508 = vstv %s1418
        %v1509 = vmul.f32 %v1508, %v1507
        %v1510 = vadd.f32 %v1430, %v1509
        %v1511 = vstv %s1419
        %v1512 = vmul.f32 %v1510, %v1511
        %1513 = vmatprep.subr.mxu0 0.0
        %1514 = vmatpush1.msra.mxu0 %v1512
        %1515 = vmatprep.subr.mxu0 0.0
        %1516 = vmatpush1.msra.mxu0 0.0
        %1517 = vmatprep.subr.mxu0 0.0
        %1518 = vmatpush1.msra.mxu0 0.0
        %1519 = vmatprep.subr.mxu0 0.0
        %1520 = vmatpush1.msra.mxu0 0.0
        %1521 = vmatprep.subr.mxu0 0.0
        %1522 = vmatpush1.msra.mxu0 0.0
        %1523 = vmatprep.subr.mxu0 0.0
        %1524 = vmatpush1.msra.mxu0 0.0
        %1525 = vmatprep.subr.mxu0 0.0
        %1526 = vmatpush1.msra.mxu0 0.0
        %1527 = vmatprep.subr.mxu0 0.0
        %1528 = vmatpush1.msra.mxu0 0.0
        %1529 = vmatprep.subr.mxu0 0.0
        %1530 = vmatpush1.msra.mxu0 0.0
        %1531 = vmatprep.subr.mxu0 0.0
        %1532 = vmatpush1.msra.mxu0 0.0
        %1533 = vmatprep.subr.mxu0 0.0
        %1534 = vmatpush1.msra.mxu0 0.0
        %1535 = vmatprep.subr.mxu0 0.0
        %1536 = vmatpush1.msra.mxu0 0.0
        %1537 = vmatprep.subr.mxu0 0.0
        %1538 = vmatpush1.msra.mxu0 0.0
        %1539 = vmatprep.subr.mxu0 0.0
        %1540 = vmatpush1.msra.mxu0 0.0
        %1541 = vmatprep.subr.mxu0 0.0
        %1542 = vmatpush1.msra.mxu0 0.0
        %1543 = vmatprep.subr.mxu0 0.0
        %1544 = vmatpush1.msra.mxu0 0.0
        %1545 = vmatprep.subr.mxu0 0.0
        %1546 = vmatpush1.msra.mxu0 0.0
        %1547 = vmatprep.subr.mxu0 0.0
        %1548 = vmatpush1.msra.mxu0 0.0
        %1549 = vmatprep.subr.mxu0 0.0
        %1550 = vmatpush1.msra.mxu0 0.0
        %1551 = vmatprep.subr.mxu0 0.0
        %1552 = vmatpush1.msra.mxu0 0.0
        %1553 = vmatprep.subr.mxu0 0.0
        %1554 = vmatpush1.msra.mxu0 0.0
        %1555 = vmatprep.subr.mxu0 0.0
        %1556 = vmatpush1.msra.mxu0 0.0
        %1557 = vmatprep.subr.mxu0 0.0
        %1558 = vmatpush1.msra.mxu0 0.0
        %1559 = vmatprep.subr.mxu0 0.0
        %1560 = vmatpush1.msra.mxu0 0.0
        %1561 = vmatprep.subr.mxu0 0.0
        %1562 = vmatpush1.msra.mxu0 0.0
        %1563 = vmatprep.subr.mxu0 0.0
        %1564 = vmatpush1.msra.mxu0 0.0
        %1565 = vmatprep.subr.mxu0 0.0
        %1566 = vmatpush1.msra.mxu0 0.0
        %1567 = vmatprep.subr.mxu0 0.0
        %1568 = vmatpush1.msra.mxu0 0.0
        %1569 = vmatprep.subr.mxu0 0.0
        %1570 = vmatpush1.msra.mxu0 0.0
        %1571 = vmatprep.subr.mxu0 0.0
        %1572 = vmatpush1.msra.mxu0 0.0
        %1573 = vmatprep.subr.mxu0 0.0
        %1574 = vmatpush1.msra.mxu0 0.0
        %1575 = vmatprep.subr.mxu0 0.0
        %1576 = vmatpush1.msra.mxu0 0.0
        %1577 = vmatprep.mubr.f32.mxu0 0.0
        %1578 = vmatmul.mubr.f32.gmra.mrb[0].mxu0 %v345
        %v1579 = vpop.f32.mrb[0].mxu0
        %v1580 = vadd.f32 %v341, %v1579
        %v1581 = vpop.f32.mrb[0].mxu0
        %1582 = vdwg.mxu0
        %v1583 = vstv %s1420
        %v1584 = vmul.f32 %v1583, %v1510
        %v1585 = vstv %s1421
        %v1586 = vmul.f32 %v1585, %v1580
        %v1587 = vsub.f32 %v1584, %v1586
        %v1588 = vstv %s1422
        %v1589 = vmul.f32 %v1588, %v1507
        %v1590 = vadd.f32 %v1430, %v1589
        %v1591 = vstv %s1423
        %v1592 = vmul.f32 %v1591, %v1587
        %v1593 = vadd.f32 %v1590, %v1592
        %s1594 = sld [smem:[#allocation2 + $0x4d]]
        %s1595 = sld [smem:[#allocation2 + $0x4e]]
        %s1596 = sld [smem:[#allocation2 + $0x4f]]
        %s1597 = sld [smem:[#allocation2 + $0x50]]
        %s1598 = sld [smem:[#allocation2 + $0x51]]
        %s1599 = sld [smem:[#allocation2 + $0x56]]
        %v1600 = vstv %s1594
        %v1601 = vmul.f32 %v1600, %v1593
        %s1602 = scalar_lea.vmem %s279, 56 [#allocation4]
        %v1603 = vld [vmem:[%s1602] sm:$0xff]
        %v1604 = vstv %s1595
        %v1605 = vmul.f32 %v1604, %v1603
        %v1606 = vadd.f32 %v1601, %v1605
        %v1607 = vstv %s1596
        %v1608 = vmul.f32 %v1606, %v1607
        %1609 = vmatprep.subr.mxu0 0.0
        %1610 = vmatpush1.msra.mxu0 %v1608
        %1611 = vmatprep.subr.mxu0 0.0
        %1612 = vmatpush1.msra.mxu0 0.0
        %1613 = vmatprep.subr.mxu0 0.0
        %1614 = vmatpush1.msra.mxu0 0.0
        %1615 = vmatprep.subr.mxu0 0.0
        %1616 = vmatpush1.msra.mxu0 0.0
        %1617 = vmatprep.subr.mxu0 0.0
        %1618 = vmatpush1.msra.mxu0 0.0
        %1619 = vmatprep.subr.mxu0 0.0
        %1620 = vmatpush1.msra.mxu0 0.0
        %1621 = vmatprep.subr.mxu0 0.0
        %1622 = vmatpush1.msra.mxu0 0.0
        %1623 = vmatprep.subr.mxu0 0.0
        %1624 = vmatpush1.msra.mxu0 0.0
        %1625 = vmatprep.subr.mxu0 0.0
        %1626 = vmatpush1.msra.mxu0 0.0
        %1627 = vmatprep.subr.mxu0 0.0
        %1628 = vmatpush1.msra.mxu0 0.0
        %1629 = vmatprep.subr.mxu0 0.0
        %1630 = vmatpush1.msra.mxu0 0.0
        %1631 = vmatprep.subr.mxu0 0.0
        %1632 = vmatpush1.msra.mxu0 0.0
        %1633 = vmatprep.subr.mxu0 0.0
        %1634 = vmatpush1.msra.mxu0 0.0
        %1635 = vmatprep.subr.mxu0 0.0
        %1636 = vmatpush1.msra.mxu0 0.0
        %1637 = vmatprep.subr.mxu0 0.0
        %1638 = vmatpush1.msra.mxu0 0.0
        %1639 = vmatprep.subr.mxu0 0.0
        %1640 = vmatpush1.msra.mxu0 0.0
        %1641 = vmatprep.subr.mxu0 0.0
        %1642 = vmatpush1.msra.mxu0 0.0
        %1643 = vmatprep.subr.mxu0 0.0
        %1644 = vmatpush1.msra.mxu0 0.0
        %1645 = vmatprep.subr.mxu0 0.0
        %1646 = vmatpush1.msra.mxu0 0.0
        %1647 = vmatprep.subr.mxu0 0.0
        %1648 = vmatpush1.msra.mxu0 0.0
        %1649 = vmatprep.subr.mxu0 0.0
        %1650 = vmatpush1.msra.mxu0 0.0
        %1651 = vmatprep.subr.mxu0 0.0
        %1652 = vmatpush1.msra.mxu0 0.0
        %1653 = vmatprep.subr.mxu0 0.0
        %1654 = vmatpush1.msra.mxu0 0.0
        %1655 = vmatprep.subr.mxu0 0.0
        %1656 = vmatpush1.msra.mxu0 0.0
        %1657 = vmatprep.subr.mxu0 0.0
        %1658 = vmatpush1.msra.mxu0 0.0
        %1659 = vmatprep.subr.mxu0 0.0
        %1660 = vmatpush1.msra.mxu0 0.0
        %1661 = vmatprep.subr.mxu0 0.0
        %1662 = vmatpush1.msra.mxu0 0.0
        %1663 = vmatprep.subr.mxu0 0.0
        %1664 = vmatpush1.msra.mxu0 0.0
        %1665 = vmatprep.subr.mxu0 0.0
        %1666 = vmatpush1.msra.mxu0 0.0
        %1667 = vmatprep.subr.mxu0 0.0
        %1668 = vmatpush1.msra.mxu0 0.0
        %1669 = vmatprep.subr.mxu0 0.0
        %1670 = vmatpush1.msra.mxu0 0.0
        %1671 = vmatprep.subr.mxu0 0.0
        %1672 = vmatpush1.msra.mxu0 0.0
        %1673 = vmatprep.mubr.f32.mxu0 0.0
        %1674 = vmatmul.mubr.f32.gmra.mrb[0].mxu0 %v345
        %v1675 = vpop.f32.mrb[0].mxu0
        %v1676 = vadd.f32 %v341, %v1675
        %v1677 = vpop.f32.mrb[0].mxu0
        %1678 = vdwg.mxu0
        %v1679 = vstv %s1597
        %v1680 = vmul.f32 %v1679, %v1606
        %v1681 = vstv %s1598
        %v1682 = vmul.f32 %v1681, %v1676
        %v1683 = vsub.f32 %v1680, %v1682
        %v1684 = vstv %s1599
        %v1685 = vmul.f32 %v1684, %v1683
        %v1686 = vadd.f32 %v1606, %v1685
        %1687 = vst [vmem:[%s315] sm:$0xff] %v1686
        %p1688 = scmp.lt.s32.totalorder %s17, 1
        %s1689 = scalar_select %p1688, %s17, 1
        %s1690 = smul.addr %s1689, 8
        %s1691 = scalar_lea.vmem %s5, %s1690
        // Predicated region
        $region83: #{vp_sample_pallas.1} parent=73 // pred_check
          %p1692 = pneg %p150
        $region84: #{vp_sample_pallas.1} parent=73 // pred_check_branch
          %1694 = sbr.rel (%p1692) target = $region86
        $region85: #{vp_sample_pallas.1} parent=73 // pred_region
          _
        $region86: #{vp_sample_pallas.1} parent=73 // pred_fallthru
          _
      $region74: #{vp_sample_pallas.1} parent=5 // pred_fallthru
        _
      %p1695 = scmp.le.s32.totalorder 2, %s12
      // Predicated region
      $region87: #{vp_sample_pallas.1} parent=5 // pred_check
        %p1696 = pneg %p1695
      $region88: #{vp_sample_pallas.1} parent=5 // pred_check_branch
        %1698 = sbr.rel (%p1696) target = $region90
      $region89: #{vp_sample_pallas.1} parent=5 // pred_region
        %s1699 = ssub.s32 %s12, 2
        // Predicated region
        $region91: #{vp_sample_pallas.1} parent=89 // pred_check
          %p1700 = pneg %p156
        $region92: #{vp_sample_pallas.1} parent=89 // pred_check_branch
          %1702 = sbr.rel (%p1700) target = $region94
        $region93: #{vp_sample_pallas.1} parent=89 // pred_region
          %p1703 = scmp.lt.s32.totalorder %s18, 1
          %s1704 = scalar_select %p1703, %s18, 1
          %s1705 = smul.addr %s1704, 8
          %s1706 = scalar_lea.vmem %s5, %s1705
        $region94: #{vp_sample_pallas.1} parent=89 // pred_fallthru
          _
      $region90: #{vp_sample_pallas.1} parent=5 // pred_fallthru
        _
    $region6: #{vp_sample_pallas.1} parent=1 // loop_footer
      %s16 = sadd.s32 1, %s12
    $region7: #{vp_sample_pallas.1} parent=1 // loop_footer_branch
      %11 = sbr.rel target = $region3
    $region8: #{vp_sample_pallas.1} parent=1 // loop_exit
      _
    %1707 = vsyncpa [#allocation3], 1
    %s1708 = scalar_lea.sflag [#allocation3], 1
    %1709 = vsyncpa %s1708, 1

</llo_original>
